<compile_context>
chip_gen: v7x
topology: tpu7x:2x2x1
jax: 0.10.0
libtpu: 0.0.40
codegen_flags: <defaults>
</compile_context>

<pallas_src>
import functools

import jax
import jax.numpy as jnp
from jax.experimental import pallas as pl
from jax.experimental.pallas import tpu as pltpu


def _round_up(x, m):
    return ((x + m - 1) // m) * m


def _decoder_kernel(z_ref, w1_ref, b1_ref, w2r_ref, b2r_ref, w2p_ref, b2p_ref,
                    recon_ref, pred_ref):
    """One grid step: a [tm, Z] token tile through both MLP heads."""
    zdim = w2r_ref.shape[0]
    z = z_ref[...]                                                 # [tm, Z]

    # Fused layer-1 of both heads: [tm, Z] @ [Z, 2Z], f32 accumulation.
    h = jnp.dot(z, w1_ref[...], preferred_element_type=jnp.float32) + b1_ref[...]
    h = jnp.maximum(h, 0.0).astype(w2r_ref.dtype)                  # [tm, 2Z]

    # Layer-2 split into two dense matmuls (no zero-padded block-diagonal).
    recon = jnp.dot(h[:, :zdim], w2r_ref[...],
                    preferred_element_type=jnp.float32) + b2r_ref[...]
    pred = jnp.dot(h[:, zdim:], w2p_ref[...],
                   preferred_element_type=jnp.float32) + b2p_ref[...]

    recon_ref[...] = recon.astype(recon_ref.dtype)
    pred_ref[...] = pred.astype(pred_ref.dtype)


def _weight_spec(shape, single_buffer):
    """Full-array block with constant index_map -> resident in VMEM across the
    whole grid.  With single_buffer=True the redundant second pipeline buffer
    is dropped (constant index => revisited every step), freeing VMEM for a
    bigger row tile (matters most on v7x's 64 MiB VMEM)."""
    idx = lambda i: (0,) * len(shape)
    if single_buffer:
        try:
            return pl.BlockSpec(shape, idx, pipeline_mode=pl.Buffered(1))
        except TypeError:
            pass  # pipeline_mode kwarg unavailable on this jax build
    return pl.BlockSpec(shape, idx)


def decoder_forward(z, params, *, recon_len, pred_len, out_dim, tm=1024,
                    compute_dtype=jnp.float32, single_buffer_weights=True):
    """z: [B, N, z_dim] -> (x_recon [B,N,out_dim,recon_len], x_pred)."""
    B, N, Z = z.shape
    M = B * N
    rdim = recon_len * out_dim
    pdim = pred_len * out_dim

    w1r, b1r, w2r, b2r, w1p, b1p, w2p, b2p = params

    # --- parameter packing (one-time, outside the kernel) -------------------
    # Permute recon layer-2 columns so the flat recon output is out_dim-major
    # (plain reshape gives [B, N, out_dim, recon_len]; no transpose op).
    perm = jnp.arange(rdim).reshape(recon_len, out_dim).T.reshape(-1)
    w2r_p = w2r[:, perm].astype(compute_dtype)
    b2r_p = b2r[:, perm].astype(jnp.float32)

    # Fused layer-1: single [Z, 2Z] weight, [1, 2Z] f32 bias.
    w1_cat = jnp.concatenate([w1r, w1p], axis=1).astype(compute_dtype)
    b1_cat = jnp.concatenate([b1r, b1p], axis=1).astype(jnp.float32)
    w2p_c = w2p.astype(compute_dtype)
    b2p_c = b2p.astype(jnp.float32)

    # --- row tiling ----------------------------------------------------------
    esz = jnp.dtype(compute_dtype).itemsize
    m8 = _round_up(M, 8)
    tm = max(8, min(_round_up(int(tm), 8), m8))

    # VMEM budget: z tile (compute dtype) + two f32 output tiles, double
    # buffered; weights/biases resident (x2 if they stay double-buffered).
    per_row = 2 * (Z * esz + (rdim + pdim) * 4)
    fixed = (Z * 2 * Z + Z * rdim + Z * pdim) * esz + (2 * Z + rdim + pdim) * 4
    if not single_buffer_weights:
        fixed *= 2
    budget = 40 << 20                      # headroom under 64 MiB (v7x ceiling)
    while tm > 8 and fixed + per_row * tm > budget:
        tm = max(8, _round_up(tm // 2, 8))

    # v7x has 2 TensorCores; the "parallel" grid axis is how work shards across
    # them, so guarantee >= 2 grid steps whenever there are enough rows.
    if m8 // tm < 2 and m8 >= 16:
        tm = max(8, _round_up(m8 // 2, 8))

    m_pad = _round_up(M, tm)
    grid = (m_pad // tm,)

    z2d = z.reshape(M, Z).astype(compute_dtype)
    if m_pad != M:
        z2d = jnp.pad(z2d, ((0, m_pad - M), (0, 0)))

    vmem_limit = int(min(max(fixed + per_row * tm + (4 << 20), 16 << 20),
                         64 << 20))

    cost = pl.CostEstimate(
        flops=2 * M * Z * (2 * Z + rdim + pdim),
        transcendentals=0,
        bytes_accessed=(M * Z * esz
                        + (Z * 2 * Z + Z * rdim + Z * pdim) * esz
                        + (2 * Z + rdim + pdim) * 4
                        + M * (rdim + pdim) * 4))

    out_recon, out_pred = pl.pallas_call(
        _decoder_kernel,
        out_shape=(jax.ShapeDtypeStruct((m_pad, rdim), jnp.float32),
                   jax.ShapeDtypeStruct((m_pad, pdim), jnp.float32)),
        grid_spec=pltpu.PrefetchScalarGridSpec(
            num_scalar_prefetch=0,
            grid=grid,
            in_specs=[
                pl.BlockSpec((tm, Z), lambda i: (i, 0)),            # z tile
                _weight_spec((Z, 2 * Z), single_buffer_weights),    # w1 fused
                _weight_spec((1, 2 * Z), single_buffer_weights),    # b1 fused
                _weight_spec((Z, rdim), single_buffer_weights),     # w2 recon
                _weight_spec((1, rdim), single_buffer_weights),     # b2 recon
                _weight_spec((Z, pdim), single_buffer_weights),     # w2 pred
                _weight_spec((1, pdim), single_buffer_weights),     # b2 pred
            ],
            out_specs=(pl.BlockSpec((tm, rdim), lambda i: (i, 0)),
                       pl.BlockSpec((tm, pdim), lambda i: (i, 0))),
        ),
        compiler_params=pltpu.CompilerParams(
            dimension_semantics=("parallel",),
            vmem_limit_bytes=vmem_limit),
        cost_estimate=cost,
    )(z2d, w1_cat, b1_cat, w2r_p, b2r_p, w2p_c, b2p_c)

    # --- glue: drop row padding, reshape (already out_dim-major) ------------
    x_recon = out_recon[:M].reshape(B, N, out_dim, recon_len)
    if pred_len == 1:
        # PyTorch: view(B,N,1,out_dim).squeeze(2) -> [B, N, out_dim]
        x_pred = out_pred[:M].reshape(B, N, out_dim)
    else:
        # squeeze(2) is a no-op when pred_len != 1
        x_pred = out_pred[:M].reshape(B, N, pred_len, out_dim)
    return x_recon, x_pred


def init_params(key, z_dim, out_dim, recon_len, pred_len):
    """Deterministic synthetic params; Linear weights stored as [in, out]."""
    ks = jax.random.split(key, 8)
    rdim = recon_len * out_dim
    pdim = pred_len * out_dim

    def lin(kw, kb, fan_in, fan_out):
        bound = 1.0 / jnp.sqrt(fan_in)
        w = jax.random.uniform(kw, (fan_in, fan_out), jnp.float32, -bound, bound)
        b = jax.random.uniform(kb, (1, fan_out), jnp.float32, -bound, bound)
        return w, b

    w1r, b1r = lin(ks[0], ks[1], z_dim, z_dim)
    w2r, b2r = lin(ks[2], ks[3], z_dim, rdim)
    w1p, b1p = lin(ks[4], ks[5], z_dim, z_dim)
    w2p, b2p = lin(ks[6], ks[7], z_dim, pdim)
    return (w1r, b1r, w2r, b2r, w1p, b1p, w2p, b2p)


def decoder_ref(z, params, *, recon_len, pred_len, out_dim):
    """Pure-JAX reference of the PyTorch forward."""
    B, N, _ = z.shape
    w1r, b1r, w2r, b2r, w1p, b1p, w2p, b2p = params
    h_r = jnp.maximum(z @ w1r + b1r[0], 0.0)
    xr = (h_r @ w2r + b2r[0]).reshape(B, N, recon_len, out_dim)
    xr = jnp.swapaxes(xr, 2, 3)
    h_p = jnp.maximum(z @ w1p + b1p[0], 0.0)
    xp = (h_p @ w2p + b2p[0]).reshape(B, N, pred_len, out_dim)
    if pred_len == 1:
        xp = jnp.squeeze(xp, axis=2)
    return xr, xp


if __name__ == "__main__":
    # Small shapes consistent with the module:
    #   z: [B, N, z_dim] -> x_recon [B,N,out_dim,recon_len], x_pred [B,N,out_dim]
    B, N, Z = 2, 8, 32
    out_dim, recon_len, pred_len = 4, 8, 1  # pred_len=1 so squeeze(2) applies

    key = jax.random.PRNGKey(0)
    kz, kp = jax.random.split(key)
    z = jax.random.normal(kz, (B, N, Z), dtype=jnp.float32)
    params = init_params(kp, Z, out_dim, recon_len, pred_len)

    def run(compute_dtype, single_buffer):
        f = jax.jit(functools.partial(
            decoder_forward, recon_len=recon_len, pred_len=pred_len,
            out_dim=out_dim, compute_dtype=compute_dtype,
            single_buffer_weights=single_buffer))
        out = f(z, params)
        jax.block_until_ready(out)
        return out

    # f32 operand path (default): strict check against the pure-JAX reference.
    single_buffer = True
    try:
        x_recon, x_pred = run(jnp.float32, single_buffer)
    except Exception:
        # pl.Buffered(1) single-buffering not supported on this jax build ->
        # fall back to default double-buffering of the (small) weight blocks.
        single_buffer = False
        x_recon, x_pred = run(jnp.float32, single_buffer)

    xr_ref, xp_ref = decoder_ref(z, params, recon_len=recon_len,
                                 pred_len=pred_len, out_dim=out_dim)
    assert x_recon.shape == (B, N, out_dim, recon_len)
    assert x_pred.shape == (B, N, out_dim)
    assert jnp.allclose(x_recon, xr_ref, atol=1e-5, rtol=1e-5)
    assert jnp.allclose(x_pred, xp_ref, atol=1e-5, rtol=1e-5)

    # bf16-operand path (perf-review suggestion): halves z/weight HBM+VMEM and
    # feeds the MXU at its native bf16 rate; accumulation stays f32.  Gated on
    # a (looser) accuracy check as it is a numerics change.
    xr_bf, xp_bf = run(jnp.bfloat16, single_buffer)
    assert jnp.allclose(xr_bf, xr_ref, atol=5e-2, rtol=5e-2)
    assert jnp.allclose(xp_bf, xp_ref, atol=5e-2, rtol=5e-2)

    print("KERNEL_OK")
</pallas_src>

<mosaic_0001>
module attributes {stable_mosaic.version = 11 : i64} {
  func.func @_decoder_kernel(%arg0: i32, %arg1: memref<8x32xf32, #tpu.memory_space<vmem>>, %arg2: memref<32x64xf32, #tpu.memory_space<vmem>>, %arg3: memref<1x64xf32, #tpu.memory_space<vmem>>, %arg4: memref<32x32xf32, #tpu.memory_space<vmem>>, %arg5: memref<1x32xf32, #tpu.memory_space<vmem>>, %arg6: memref<32x4xf32, #tpu.memory_space<vmem>>, %arg7: memref<1x4xf32, #tpu.memory_space<vmem>>, %arg8: memref<8x32xf32, #tpu.memory_space<vmem>>, %arg9: memref<8x4xf32, #tpu.memory_space<vmem>>) attributes {dimension_semantics = [#tpu.dimension_semantics<parallel>], iteration_bounds = array<i64: 2>, scalar_prefetch = 0 : i64, scratch_operands = 0 : i64, tpu.core_type = #tpu.core_type<tc>, window_params = [{transform_indices = @transform_0, window_bounds = array<i64: 8, 32>}, {pipeline_mode = #tpu.pipeline_mode<synchronous>, transform_indices = @transform_1, window_bounds = array<i64: 32, 64>}, {pipeline_mode = #tpu.pipeline_mode<synchronous>, transform_indices = @transform_2, window_bounds = array<i64: 1, 64>}, {pipeline_mode = #tpu.pipeline_mode<synchronous>, transform_indices = @transform_3, window_bounds = array<i64: 32, 32>}, {pipeline_mode = #tpu.pipeline_mode<synchronous>, transform_indices = @transform_4, window_bounds = array<i64: 1, 32>}, {pipeline_mode = #tpu.pipeline_mode<synchronous>, transform_indices = @transform_5, window_bounds = array<i64: 32, 4>}, {pipeline_mode = #tpu.pipeline_mode<synchronous>, transform_indices = @transform_6, window_bounds = array<i64: 1, 4>}, {transform_indices = @transform_7, window_bounds = array<i64: 8, 32>}, {transform_indices = @transform_8, window_bounds = array<i64: 8, 4>}]} {
    %c0 = arith.constant 0 : index
    %c0_0 = arith.constant 0 : index
    %0 = vector.load %arg1[%c0, %c0_0] : memref<8x32xf32, #tpu.memory_space<vmem>>, vector<8x32xf32>
    %c0_1 = arith.constant 0 : index
    %c0_2 = arith.constant 0 : index
    %1 = vector.load %arg2[%c0_1, %c0_2] : memref<32x64xf32, #tpu.memory_space<vmem>>, vector<32x64xf32>
    %cst = arith.constant dense<0.000000e+00> : vector<8x64xf32>
    %2 = tpu.matmul %0, %1, %cst {dimension_numbers = #tpu.dot_dimension_numbers<[1], [0], [0], [1], [0, 0, 1, 1], [], []>} : vector<8x32xf32>, vector<32x64xf32>, vector<8x64xf32> -> vector<8x64xf32>
    %c0_3 = arith.constant 0 : index
    %c0_4 = arith.constant 0 : index
    %3 = vector.load %arg3[%c0_3, %c0_4] : memref<1x64xf32, #tpu.memory_space<vmem>>, vector<1x64xf32>
    %4 = vector.broadcast %3 : vector<1x64xf32> to vector<8x64xf32>
    %5 = arith.addf %2, %4 : vector<8x64xf32>
    %cst_5 = arith.constant 0.000000e+00 : f32
    %6 = vector.broadcast %cst_5 : f32 to vector<8x64xf32>
    %7 = arith.maximumf %5, %6 : vector<8x64xf32>
    %8 = vector.extract_strided_slice %7 {offsets = [0, 0], sizes = [8, 32], strides = [1, 1]} : vector<8x64xf32> to vector<8x32xf32>
    %c0_6 = arith.constant 0 : index
    %c0_7 = arith.constant 0 : index
    %9 = vector.load %arg4[%c0_6, %c0_7] : memref<32x32xf32, #tpu.memory_space<vmem>>, vector<32x32xf32>
    %cst_8 = arith.constant dense<0.000000e+00> : vector<8x32xf32>
    %10 = tpu.matmul %8, %9, %cst_8 {dimension_numbers = #tpu.dot_dimension_numbers<[1], [0], [0], [1], [0, 0, 1, 1], [], []>} : vector<8x32xf32>, vector<32x32xf32>, vector<8x32xf32> -> vector<8x32xf32>
    %c0_9 = arith.constant 0 : index
    %c0_10 = arith.constant 0 : index
    %11 = vector.load %arg5[%c0_9, %c0_10] : memref<1x32xf32, #tpu.memory_space<vmem>>, vector<1x32xf32>
    %12 = vector.broadcast %11 : vector<1x32xf32> to vector<8x32xf32>
    %13 = arith.addf %10, %12 : vector<8x32xf32>
    %14 = vector.extract_strided_slice %7 {offsets = [0, 32], sizes = [8, 32], strides = [1, 1]} : vector<8x64xf32> to vector<8x32xf32>
    %c0_11 = arith.constant 0 : index
    %c0_12 = arith.constant 0 : index
    %15 = vector.load %arg6[%c0_11, %c0_12] : memref<32x4xf32, #tpu.memory_space<vmem>>, vector<32x4xf32>
    %cst_13 = arith.constant dense<0.000000e+00> : vector<8x4xf32>
    %16 = tpu.matmul %14, %15, %cst_13 {dimension_numbers = #tpu.dot_dimension_numbers<[1], [0], [0], [1], [0, 0, 1, 1], [], []>} : vector<8x32xf32>, vector<32x4xf32>, vector<8x4xf32> -> vector<8x4xf32>
    %c0_14 = arith.constant 0 : index
    %c0_15 = arith.constant 0 : index
    %17 = vector.load %arg7[%c0_14, %c0_15] : memref<1x4xf32, #tpu.memory_space<vmem>>, vector<1x4xf32>
    %18 = vector.broadcast %17 : vector<1x4xf32> to vector<8x4xf32>
    %19 = arith.addf %16, %18 : vector<8x4xf32>
    %c0_16 = arith.constant 0 : index
    %c0_17 = arith.constant 0 : index
    %20 = vector.load %arg8[%c0_16, %c0_17] : memref<8x32xf32, #tpu.memory_space<vmem>>, vector<8x32xf32>
    tpu.vector_store %arg8[%c0_16, %c0_17], %13 {strides = array<i32>} : memref<8x32xf32, #tpu.memory_space<vmem>>, vector<8x32xf32>,
    %c0_18 = arith.constant 0 : index
    %c0_19 = arith.constant 0 : index
    %21 = vector.load %arg9[%c0_18, %c0_19] : memref<8x4xf32, #tpu.memory_space<vmem>>, vector<8x4xf32>
    tpu.vector_store %arg9[%c0_18, %c0_19], %19 {strides = array<i32>} : memref<8x4xf32, #tpu.memory_space<vmem>>, vector<8x4xf32>,
    return
  }
  func.func @transform_0(%arg0: i32) -> (i32, i32) {
    %c0_i32 = arith.constant 0 : i32
    %c0_i32_0 = arith.constant 0 : i32
    return %arg0, %c0_i32 : i32, i32
  }
  func.func @transform_1(%arg0: i32) -> (i32, i32) {
    %c0_i32 = arith.constant 0 : i32
    %c0_i32_0 = arith.constant 0 : i32
    %c0_i32_1 = arith.constant 0 : i32
    return %c0_i32, %c0_i32_0 : i32, i32
  }
  func.func @transform_2(%arg0: i32) -> (i32, i32) {
    %c0_i32 = arith.constant 0 : i32
    %c0_i32_0 = arith.constant 0 : i32
    %c0_i32_1 = arith.constant 0 : i32
    return %c0_i32, %c0_i32_0 : i32, i32
  }
  func.func @transform_3(%arg0: i32) -> (i32, i32) {
    %c0_i32 = arith.constant 0 : i32
    %c0_i32_0 = arith.constant 0 : i32
    %c0_i32_1 = arith.constant 0 : i32
    return %c0_i32, %c0_i32_0 : i32, i32
  }
  func.func @transform_4(%arg0: i32) -> (i32, i32) {
    %c0_i32 = arith.constant 0 : i32
    %c0_i32_0 = arith.constant 0 : i32
    %c0_i32_1 = arith.constant 0 : i32
    return %c0_i32, %c0_i32_0 : i32, i32
  }
  func.func @transform_5(%arg0: i32) -> (i32, i32) {
    %c0_i32 = arith.constant 0 : i32
    %c0_i32_0 = arith.constant 0 : i32
    %c0_i32_1 = arith.constant 0 : i32
    return %c0_i32, %c0_i32_0 : i32, i32
  }
  func.func @transform_6(%arg0: i32) -> (i32, i32) {
    %c0_i32 = arith.constant 0 : i32
    %c0_i32_0 = arith.constant 0 : i32
    %c0_i32_1 = arith.constant 0 : i32
    return %c0_i32, %c0_i32_0 : i32, i32
  }
  func.func @transform_7(%arg0: i32) -> (i32, i32) {
    %c0_i32 = arith.constant 0 : i32
    %c0_i32_0 = arith.constant 0 : i32
    return %arg0, %c0_i32 : i32, i32
  }
  func.func @transform_8(%arg0: i32) -> (i32, i32) {
    %c0_i32 = arith.constant 0 : i32
    %c0_i32_0 = arith.constant 0 : i32
    return %arg0, %c0_i32 : i32, i32
  }
}

module attributes {stable_mosaic.version = 11 : i64} {
  func.func @_decoder_kernel(%arg0: i32, %arg1: memref<8x32xf32, #tpu.memory_space<vmem>>, %arg2: memref<32x64xf32, #tpu.memory_space<vmem>>, %arg3: memref<1x64xf32, #tpu.memory_space<vmem>>, %arg4: memref<32x32xf32, #tpu.memory_space<vmem>>, %arg5: memref<1x32xf32, #tpu.memory_space<vmem>>, %arg6: memref<32x4xf32, #tpu.memory_space<vmem>>, %arg7: memref<1x4xf32, #tpu.memory_space<vmem>>, %arg8: memref<8x32xf32, #tpu.memory_space<vmem>>, %arg9: memref<8x4xf32, #tpu.memory_space<vmem>>) attributes {dimension_semantics = [#tpu.dimension_semantics<parallel>], iteration_bounds = array<i64: 2>, scalar_prefetch = 0 : i64, scratch_operands = 0 : i64, tpu.core_type = #tpu.core_type<tc>, window_params = [{transform_indices = @transform_0, window_bounds = array<i64: 8, 32>}, {pipeline_mode = #tpu.pipeline_mode<synchronous>, transform_indices = @transform_1, window_bounds = array<i64: 32, 64>}, {pipeline_mode = #tpu.pipeline_mode<synchronous>, transform_indices = @transform_2, window_bounds = array<i64: 1, 64>}, {pipeline_mode = #tpu.pipeline_mode<synchronous>, transform_indices = @transform_3, window_bounds = array<i64: 32, 32>}, {pipeline_mode = #tpu.pipeline_mode<synchronous>, transform_indices = @transform_4, window_bounds = array<i64: 1, 32>}, {pipeline_mode = #tpu.pipeline_mode<synchronous>, transform_indices = @transform_5, window_bounds = array<i64: 32, 4>}, {pipeline_mode = #tpu.pipeline_mode<synchronous>, transform_indices = @transform_6, window_bounds = array<i64: 1, 4>}, {transform_indices = @transform_7, window_bounds = array<i64: 8, 32>}, {transform_indices = @transform_8, window_bounds = array<i64: 8, 4>}]} {
    %c0 = arith.constant 0 : index
    %c0_0 = arith.constant 0 : index
    %0 = vector.load %arg1[%c0, %c0_0] : memref<8x32xf32, #tpu.memory_space<vmem>>, vector<8x32xf32>
    %c0_1 = arith.constant 0 : index
    %c0_2 = arith.constant 0 : index
    %1 = vector.load %arg2[%c0_1, %c0_2] : memref<32x64xf32, #tpu.memory_space<vmem>>, vector<32x64xf32>
    %cst = arith.constant dense<0.000000e+00> : vector<8x64xf32>
    %2 = tpu.matmul %0, %1, %cst {dimension_numbers = #tpu.dot_dimension_numbers<[1], [0], [0], [1], [0, 0, 1, 1], [], []>} : vector<8x32xf32>, vector<32x64xf32>, vector<8x64xf32> -> vector<8x64xf32>
    %c0_3 = arith.constant 0 : index
    %c0_4 = arith.constant 0 : index
    %3 = vector.load %arg3[%c0_3, %c0_4] : memref<1x64xf32, #tpu.memory_space<vmem>>, vector<1x64xf32>
    %4 = vector.broadcast %3 : vector<1x64xf32> to vector<8x64xf32>
    %5 = arith.addf %2, %4 : vector<8x64xf32>
    %cst_5 = arith.constant 0.000000e+00 : f32
    %6 = vector.broadcast %cst_5 : f32 to vector<8x64xf32>
    %7 = arith.maximumf %5, %6 : vector<8x64xf32>
    %8 = vector.extract_strided_slice %7 {offsets = [0, 0], sizes = [8, 32], strides = [1, 1]} : vector<8x64xf32> to vector<8x32xf32>
    %c0_6 = arith.constant 0 : index
    %c0_7 = arith.constant 0 : index
    %9 = vector.load %arg4[%c0_6, %c0_7] : memref<32x32xf32, #tpu.memory_space<vmem>>, vector<32x32xf32>
    %cst_8 = arith.constant dense<0.000000e+00> : vector<8x32xf32>
    %10 = tpu.matmul %8, %9, %cst_8 {dimension_numbers = #tpu.dot_dimension_numbers<[1], [0], [0], [1], [0, 0, 1, 1], [], []>} : vector<8x32xf32>, vector<32x32xf32>, vector<8x32xf32> -> vector<8x32xf32>
    %c0_9 = arith.constant 0 : index
    %c0_10 = arith.constant 0 : index
    %11 = vector.load %arg5[%c0_9, %c0_10] : memref<1x32xf32, #tpu.memory_space<vmem>>, vector<1x32xf32>
    %12 = vector.broadcast %11 : vector<1x32xf32> to vector<8x32xf32>
    %13 = arith.addf %10, %12 : vector<8x32xf32>
    %14 = vector.extract_strided_slice %7 {offsets = [0, 32], sizes = [8, 32], strides = [1, 1]} : vector<8x64xf32> to vector<8x32xf32>
    %c0_11 = arith.constant 0 : index
    %c0_12 = arith.constant 0 : index
    %15 = vector.load %arg6[%c0_11, %c0_12] : memref<32x4xf32, #tpu.memory_space<vmem>>, vector<32x4xf32>
    %cst_13 = arith.constant dense<0.000000e+00> : vector<8x4xf32>
    %16 = tpu.matmul %14, %15, %cst_13 {dimension_numbers = #tpu.dot_dimension_numbers<[1], [0], [0], [1], [0, 0, 1, 1], [], []>} : vector<8x32xf32>, vector<32x4xf32>, vector<8x4xf32> -> vector<8x4xf32>
    %c0_14 = arith.constant 0 : index
    %c0_15 = arith.constant 0 : index
    %17 = vector.load %arg7[%c0_14, %c0_15] : memref<1x4xf32, #tpu.memory_space<vmem>>, vector<1x4xf32>
    %18 = vector.broadcast %17 : vector<1x4xf32> to vector<8x4xf32>
    %19 = arith.addf %16, %18 : vector<8x4xf32>
    %c0_16 = arith.constant 0 : index
    %c0_17 = arith.constant 0 : index
    %20 = vector.load %arg8[%c0_16, %c0_17] : memref<8x32xf32, #tpu.memory_space<vmem>>, vector<8x32xf32>
    tpu.vector_store %arg8[%c0_16, %c0_17], %13 {strides = array<i32>} : memref<8x32xf32, #tpu.memory_space<vmem>>, vector<8x32xf32>,
    %c0_18 = arith.constant 0 : index
    %c0_19 = arith.constant 0 : index
    %21 = vector.load %arg9[%c0_18, %c0_19] : memref<8x4xf32, #tpu.memory_space<vmem>>, vector<8x4xf32>
    tpu.vector_store %arg9[%c0_18, %c0_19], %19 {strides = array<i32>} : memref<8x4xf32, #tpu.memory_space<vmem>>, vector<8x4xf32>,
    return
  }
  func.func @transform_0(%arg0: i32) -> (i32, i32) {
    %c0_i32 = arith.constant 0 : i32
    %c0_i32_0 = arith.constant 0 : i32
    return %arg0, %c0_i32 : i32, i32
  }
  func.func @transform_1(%arg0: i32) -> (i32, i32) {
    %c0_i32 = arith.constant 0 : i32
    %c0_i32_0 = arith.constant 0 : i32
    %c0_i32_1 = arith.constant 0 : i32
    return %c0_i32, %c0_i32_0 : i32, i32
  }
  func.func @transform_2(%arg0: i32) -> (i32, i32) {
    %c0_i32 = arith.constant 0 : i32
    %c0_i32_0 = arith.constant 0 : i32
    %c0_i32_1 = arith.constant 0 : i32
    return %c0_i32, %c0_i32_0 : i32, i32
  }
  func.func @transform_3(%arg0: i32) -> (i32, i32) {
    %c0_i32 = arith.constant 0 : i32
    %c0_i32_0 = arith.constant 0 : i32
    %c0_i32_1 = arith.constant 0 : i32
    return %c0_i32, %c0_i32_0 : i32, i32
  }
  func.func @transform_4(%arg0: i32) -> (i32, i32) {
    %c0_i32 = arith.constant 0 : i32
    %c0_i32_0 = arith.constant 0 : i32
    %c0_i32_1 = arith.constant 0 : i32
    return %c0_i32, %c0_i32_0 : i32, i32
  }
  func.func @transform_5(%arg0: i32) -> (i32, i32) {
    %c0_i32 = arith.constant 0 : i32
    %c0_i32_0 = arith.constant 0 : i32
    %c0_i32_1 = arith.constant 0 : i32
    return %c0_i32, %c0_i32_0 : i32, i32
  }
  func.func @transform_6(%arg0: i32) -> (i32, i32) {
    %c0_i32 = arith.constant 0 : i32
    %c0_i32_0 = arith.constant 0 : i32
    %c0_i32_1 = arith.constant 0 : i32
    return %c0_i32, %c0_i32_0 : i32, i32
  }
  func.func @transform_7(%arg0: i32) -> (i32, i32) {
    %c0_i32 = arith.constant 0 : i32
    %c0_i32_0 = arith.constant 0 : i32
    return %arg0, %c0_i32 : i32, i32
  }
  func.func @transform_8(%arg0: i32) -> (i32, i32) {
    %c0_i32 = arith.constant 0 : i32
    %c0_i32_0 = arith.constant 0 : i32
    return %arg0, %c0_i32 : i32, i32
  }
}

</mosaic_0001>

<llo_original>
// kernel: decoder_forward.1
$region0: #{decoder_forward.1}
  #allocation0 [shape = 'u32[]', space=smem, size = 0x4, offset = 0x4, fixed_abs, tag = 'smem constant byte address 0x4 - core index']
  #allocation1 [shape = 'u32[144,128]{1,0:T(1,128)}', space=vmem, size = 0x12000, scoped, tag = 'internal scratch']
  %s0 = inlined_call_operand.vmem [shape: f32[16,32], index: 0, kind: input, shape index: {}]
  %s1 = inlined_call_operand.vmem [shape: f32[32,64], index: 1, kind: input, shape index: {}]
  %s2 = inlined_call_operand.vmem [shape: f32[1,64], index: 2, kind: input, shape index: {}]
  %s3 = inlined_call_operand.vmem [shape: f32[32,32], index: 3, kind: input, shape index: {}]
  %s4 = inlined_call_operand.vmem [shape: f32[1,32], index: 4, kind: input, shape index: {}]
  %s5 = inlined_call_operand.vmem [shape: f32[32,4], index: 5, kind: input, shape index: {}]
  %s6 = inlined_call_operand.vmem [shape: f32[1,4], index: 6, kind: input, shape index: {}]
  %s7 = inlined_call_operand.vmem [shape: f32[16,32], index: 7, kind: output, shape index: {0}]
  %s8 = inlined_call_operand.vmem [shape: f32[16,4], index: 8, kind: output, shape index: {1}]
  %9 = xla_tuple %s7, %s8
  %s10 = sld [smem:[#allocation0]]
  $region69: #{decoder_forward.1} parent=0
    _
  %s12 = ssub.s32 1, %s10
  %s13 = scalar_select 0, %s12, %s10
  loop: start=0, step=1, limit=4
  $region2: #{decoder_forward.1} parent=0 // loop_pre_header
    _
  $region3: #{decoder_forward.1} parent=0 // loop_header
    %s15 = sphi 0, %s19
    %p16 = scmp.ge.s32.totalorder %s15, 4
    %s25 = sphi 0, %s27
    %s28 = sphi 0, %s25
    %s29 = sphi 0, %s28
    %s45 = sphi 0, %s29
    %s49 = sphi 0, %s49
    %s51 = sphi 0, %s49
    %s52 = sphi 0, %s51
    %s66 = sphi 0, %s52
    %s70 = sphi 0, %s70
    %s72 = sphi 0, %s70
    %s73 = sphi 0, %s72
    %s87 = sphi 0, %s73
    %s91 = sphi 0, %s91
    %s93 = sphi 0, %s91
    %s94 = sphi 0, %s93
    %s108 = sphi 0, %s94
    %s112 = sphi 0, %s112
    %s114 = sphi 0, %s112
    %s115 = sphi 0, %s114
    %s129 = sphi 0, %s115
    %s133 = sphi 0, %s133
    %s135 = sphi 0, %s133
    %s136 = sphi 0, %s135
    %s150 = sphi 0, %s136
    %s154 = sphi 0, %s154
    %s156 = sphi 0, %s154
    %s157 = sphi 0, %s156
    %s171 = sphi 0, %s157
    %s177 = sphi 0, %s179
    %s180 = sphi 0, %s177
    %s181 = sphi 0, %s180
    %s197 = sphi 0, %s181
    %s203 = sphi 0, %s205
    %s206 = sphi 0, %s203
    %s207 = sphi 0, %s206
    %s223 = sphi 0, %s207
  $region4: #{decoder_forward.1} parent=0 // loop_header_branch
    %18 = sbr.rel (%p16) target = $region8
  $region5: #{decoder_forward.1} parent=0 // loop_body
    %s20 = ssub.s32 %s15, 1
    %s21 = ssub.s32 %s15, 2
    %s22 = sadd.s32 %s15, 1
    %s23 = ssub.s32 %s15, %s22
    %p24 = scmp.eq.s32.totalorder %s23, 0
    %s26 = sadd.s32 %s25, 1
    %s27 = scalar_select %p24, %s25, %s26
    %p30 = pneg %p24
    %p31 = scmp.eq.s32.totalorder %s15, 1
    %p32 = por %p30, %p31
    %p33 = scmp.ne.s32.totalorder %s25, %s28
    %p34 = scmp.eq.s32.totalorder %s15, 0
    %p35 = por %p33, %p34
    %p36 = scmp.ne.s32.totalorder %s25, %s28
    %p37 = scmp.eq.s32.totalorder %s20, 1
    %p38 = por %p36, %p37
    %p39 = scmp.ne.s32.totalorder %s28, %s29
    %p40 = scmp.eq.s32.totalorder %s20, 0
    %p41 = por %p39, %p40
    %p42 = scmp.ne.s32.totalorder %s28, %s29
    %p43 = scmp.eq.s32.totalorder %s21, 1
    %p44 = por %p42, %p43
    %p46 = scmp.ne.s32.totalorder %s29, %s45
    %p47 = scmp.eq.s32.totalorder %s21, 0
    %p48 = por %p46, %p47
    %s50 = sadd.s32 %s49, 1
    %p53 = scmp.eq.s32.totalorder %s15, 1
    %p54 = scmp.ne.s32.totalorder %s49, %s51
    %p55 = scmp.eq.s32.totalorder %s15, 0
    %p56 = por %p54, %p55
    %p57 = scmp.ne.s32.totalorder %s49, %s51
    %p58 = scmp.eq.s32.totalorder %s20, 1
    %p59 = por %p57, %p58
    %p60 = scmp.ne.s32.totalorder %s51, %s52
    %p61 = scmp.eq.s32.totalorder %s20, 0
    %p62 = por %p60, %p61
    %p63 = scmp.ne.s32.totalorder %s51, %s52
    %p64 = scmp.eq.s32.totalorder %s21, 1
    %p65 = por %p63, %p64
    %p67 = scmp.ne.s32.totalorder %s52, %s66
    %p68 = scmp.eq.s32.totalorder %s21, 0
    %p69 = por %p67, %p68
    %s71 = sadd.s32 %s70, 1
    %p74 = scmp.eq.s32.totalorder %s15, 1
    %p75 = scmp.ne.s32.totalorder %s70, %s72
    %p76 = scmp.eq.s32.totalorder %s15, 0
    %p77 = por %p75, %p76
    %p78 = scmp.ne.s32.totalorder %s70, %s72
    %p79 = scmp.eq.s32.totalorder %s20, 1
    %p80 = por %p78, %p79
    %p81 = scmp.ne.s32.totalorder %s72, %s73
    %p82 = scmp.eq.s32.totalorder %s20, 0
    %p83 = por %p81, %p82
    %p84 = scmp.ne.s32.totalorder %s72, %s73
    %p85 = scmp.eq.s32.totalorder %s21, 1
    %p86 = por %p84, %p85
    %p88 = scmp.ne.s32.totalorder %s73, %s87
    %p89 = scmp.eq.s32.totalorder %s21, 0
    %p90 = por %p88, %p89
    %s92 = sadd.s32 %s91, 1
    %p95 = scmp.eq.s32.totalorder %s15, 1
    %p96 = scmp.ne.s32.totalorder %s91, %s93
    %p97 = scmp.eq.s32.totalorder %s15, 0
    %p98 = por %p96, %p97
    %p99 = scmp.ne.s32.totalorder %s91, %s93
    %p100 = scmp.eq.s32.totalorder %s20, 1
    %p101 = por %p99, %p100
    %p102 = scmp.ne.s32.totalorder %s93, %s94
    %p103 = scmp.eq.s32.totalorder %s20, 0
    %p104 = por %p102, %p103
    %p105 = scmp.ne.s32.totalorder %s93, %s94
    %p106 = scmp.eq.s32.totalorder %s21, 1
    %p107 = por %p105, %p106
    %p109 = scmp.ne.s32.totalorder %s94, %s108
    %p110 = scmp.eq.s32.totalorder %s21, 0
    %p111 = por %p109, %p110
    %s113 = sadd.s32 %s112, 1
    %p116 = scmp.eq.s32.totalorder %s15, 1
    %p117 = scmp.ne.s32.totalorder %s112, %s114
    %p118 = scmp.eq.s32.totalorder %s15, 0
    %p119 = por %p117, %p118
    %p120 = scmp.ne.s32.totalorder %s112, %s114
    %p121 = scmp.eq.s32.totalorder %s20, 1
    %p122 = por %p120, %p121
    %p123 = scmp.ne.s32.totalorder %s114, %s115
    %p124 = scmp.eq.s32.totalorder %s20, 0
    %p125 = por %p123, %p124
    %p126 = scmp.ne.s32.totalorder %s114, %s115
    %p127 = scmp.eq.s32.totalorder %s21, 1
    %p128 = por %p126, %p127
    %p130 = scmp.ne.s32.totalorder %s115, %s129
    %p131 = scmp.eq.s32.totalorder %s21, 0
    %p132 = por %p130, %p131
    %s134 = sadd.s32 %s133, 1
    %p137 = scmp.eq.s32.totalorder %s15, 1
    %p138 = scmp.ne.s32.totalorder %s133, %s135
    %p139 = scmp.eq.s32.totalorder %s15, 0
    %p140 = por %p138, %p139
    %p141 = scmp.ne.s32.totalorder %s133, %s135
    %p142 = scmp.eq.s32.totalorder %s20, 1
    %p143 = por %p141, %p142
    %p144 = scmp.ne.s32.totalorder %s135, %s136
    %p145 = scmp.eq.s32.totalorder %s20, 0
    %p146 = por %p144, %p145
    %p147 = scmp.ne.s32.totalorder %s135, %s136
    %p148 = scmp.eq.s32.totalorder %s21, 1
    %p149 = por %p147, %p148
    %p151 = scmp.ne.s32.totalorder %s136, %s150
    %p152 = scmp.eq.s32.totalorder %s21, 0
    %p153 = por %p151, %p152
    %s155 = sadd.s32 %s154, 1
    %p158 = scmp.eq.s32.totalorder %s15, 1
    %p159 = scmp.ne.s32.totalorder %s154, %s156
    %p160 = scmp.eq.s32.totalorder %s15, 0
    %p161 = por %p159, %p160
    %p162 = scmp.ne.s32.totalorder %s154, %s156
    %p163 = scmp.eq.s32.totalorder %s20, 1
    %p164 = por %p162, %p163
    %p165 = scmp.ne.s32.totalorder %s156, %s157
    %p166 = scmp.eq.s32.totalorder %s20, 0
    %p167 = por %p165, %p166
    %p168 = scmp.ne.s32.totalorder %s156, %s157
    %p169 = scmp.eq.s32.totalorder %s21, 1
    %p170 = por %p168, %p169
    %p172 = scmp.ne.s32.totalorder %s157, %s171
    %p173 = scmp.eq.s32.totalorder %s21, 0
    %p174 = por %p172, %p173
    %s175 = ssub.s32 %s15, %s22
    %p176 = scmp.eq.s32.totalorder %s175, 0
    %s178 = sadd.s32 %s177, 1
    %s179 = scalar_select %p176, %s177, %s178
    %p182 = pneg %p176
    %p183 = scmp.eq.s32.totalorder %s15, 1
    %p184 = por %p182, %p183
    %p185 = scmp.ne.s32.totalorder %s177, %s180
    %p186 = scmp.eq.s32.totalorder %s15, 0
    %p187 = por %p185, %p186
    %p188 = scmp.ne.s32.totalorder %s177, %s180
    %p189 = scmp.eq.s32.totalorder %s20, 1
    %p190 = por %p188, %p189
    %p191 = scmp.ne.s32.totalorder %s180, %s181
    %p192 = scmp.eq.s32.totalorder %s20, 0
    %p193 = por %p191, %p192
    %p194 = scmp.ne.s32.totalorder %s180, %s181
    %p195 = scmp.eq.s32.totalorder %s21, 1
    %p196 = por %p194, %p195
    %p198 = scmp.ne.s32.totalorder %s181, %s197
    %p199 = scmp.eq.s32.totalorder %s21, 0
    %p200 = por %p198, %p199
    %s201 = ssub.s32 %s15, %s22
    %p202 = scmp.eq.s32.totalorder %s201, 0
    %s204 = sadd.s32 %s203, 1
    %s205 = scalar_select %p202, %s203, %s204
    %p208 = pneg %p202
    %p209 = scmp.eq.s32.totalorder %s15, 1
    %p210 = por %p208, %p209
    %p211 = scmp.ne.s32.totalorder %s203, %s206
    %p212 = scmp.eq.s32.totalorder %s15, 0
    %p213 = por %p211, %p212
    %p214 = scmp.ne.s32.totalorder %s203, %s206
    %p215 = scmp.eq.s32.totalorder %s20, 1
    %p216 = por %p214, %p215
    %p217 = scmp.ne.s32.totalorder %s206, %s207
    %p218 = scmp.eq.s32.totalorder %s20, 0
    %p219 = por %p217, %p218
    %p220 = scmp.ne.s32.totalorder %s206, %s207
    %p221 = scmp.eq.s32.totalorder %s21, 1
    %p222 = por %p220, %p221
    %p224 = scmp.ne.s32.totalorder %s207, %s223
    %p225 = scmp.eq.s32.totalorder %s21, 0
    %p226 = por %p224, %p225
    %p227 = scmp.le.s32.totalorder 1, %s15
    %p228 = scmp.lt.s32.totalorder %s15, 3
    %p229 = pnand %p227, %p228
    %p230 = pneg %p229
    // Predicated region
    $region9: #{decoder_forward.1} parent=5 // pred_check
      _
    $region10: #{decoder_forward.1} parent=5 // pred_check_branch
      %232 = sbr.rel (%p229) target = $region12
    $region11: #{decoder_forward.1} parent=5 // pred_region
      %s233 = ssub.s32 %s15, 1
      // Predicated region
      $region13: #{decoder_forward.1} parent=11 // pred_check
        %p234 = pneg %p62
      $region14: #{decoder_forward.1} parent=11 // pred_check_branch
        %236 = sbr.rel (%p234) target = $region16
      $region15: #{decoder_forward.1} parent=11 // pred_region
        _
      $region16: #{decoder_forward.1} parent=11 // pred_fallthru
        _
      // Predicated region
      $region17: #{decoder_forward.1} parent=11 // pred_check
        %p237 = pneg %p83
      $region18: #{decoder_forward.1} parent=11 // pred_check_branch
        %239 = sbr.rel (%p237) target = $region20
      $region19: #{decoder_forward.1} parent=11 // pred_region
        _
      $region20: #{decoder_forward.1} parent=11 // pred_fallthru
        _
      // Predicated region
      $region21: #{decoder_forward.1} parent=11 // pred_check
        %p240 = pneg %p104
      $region22: #{decoder_forward.1} parent=11 // pred_check_branch
        %242 = sbr.rel (%p240) target = $region24
      $region23: #{decoder_forward.1} parent=11 // pred_region
        _
      $region24: #{decoder_forward.1} parent=11 // pred_fallthru
        _
      // Predicated region
      $region25: #{decoder_forward.1} parent=11 // pred_check
        %p243 = pneg %p125
      $region26: #{decoder_forward.1} parent=11 // pred_check_branch
        %245 = sbr.rel (%p243) target = $region28
      $region27: #{decoder_forward.1} parent=11 // pred_region
        _
      $region28: #{decoder_forward.1} parent=11 // pred_fallthru
        _
      // Predicated region
      $region29: #{decoder_forward.1} parent=11 // pred_check
        %p246 = pneg %p146
      $region30: #{decoder_forward.1} parent=11 // pred_check_branch
        %248 = sbr.rel (%p246) target = $region32
      $region31: #{decoder_forward.1} parent=11 // pred_region
        _
      $region32: #{decoder_forward.1} parent=11 // pred_fallthru
        _
      // Predicated region
      $region33: #{decoder_forward.1} parent=11 // pred_check
        %p249 = pneg %p167
      $region34: #{decoder_forward.1} parent=11 // pred_check_branch
        %251 = sbr.rel (%p249) target = $region36
      $region35: #{decoder_forward.1} parent=11 // pred_region
        _
      $region36: #{decoder_forward.1} parent=11 // pred_fallthru
        _
    $region12: #{decoder_forward.1} parent=5 // pred_fallthru
      _
    %p252 = scmp.lt.s32.totalorder %s15, 2
    // Predicated region
    $region37: #{decoder_forward.1} parent=5 // pred_check
      %p253 = pneg %p252
    $region38: #{decoder_forward.1} parent=5 // pred_check_branch
      %255 = sbr.rel (%p253) target = $region40
    $region39: #{decoder_forward.1} parent=5 // pred_region
      // Predicated region
      $region41: #{decoder_forward.1} parent=39 // pred_check
        %p256 = pneg %p35
      $region42: #{decoder_forward.1} parent=39 // pred_check_branch
        %258 = sbr.rel (%p256) target = $region44
      $region43: #{decoder_forward.1} parent=39 // pred_region
        %p259 = scmp.lt.s32.totalorder %s15, 1
        %s260 = scalar_select %p259, %s15, 1
        %s261 = smul.addr %s260, 8
        %s262 = scalar_lea.vmem %s0, %s261
      $region44: #{decoder_forward.1} parent=39 // pred_fallthru
        _
    $region40: #{decoder_forward.1} parent=5 // pred_fallthru
      _
    %p263 = scmp.le.s32.totalorder 1, %s15
    %p264 = scmp.lt.s32.totalorder %s15, 3
    %p265 = pnand %p263, %p264
    %p266 = pneg %p265
    // Predicated region
    $region45: #{decoder_forward.1} parent=5 // pred_check
      _
    $region46: #{decoder_forward.1} parent=5 // pred_check_branch
      %268 = sbr.rel (%p265) target = $region48
    $region47: #{decoder_forward.1} parent=5 // pred_region
      %s269 = ssub.s32 %s15, 1
      %p270 = scmp.lt.s32.totalorder %s20, 1
      %s271 = scalar_select %p270, %s20, 1
      %s272 = smul.addr %s271, 8
      %s273 = scalar_lea.vmem %s0, %s272
      %p274 = pneg %p41
      %p275 = pneg %p38
      %p276 = pneg %p62
      %p277 = pneg %p59
      %p278 = pneg %p83
      %p279 = pneg %p80
      %p280 = pneg %p104
      %p281 = pneg %p101
      %p282 = pneg %p125
      %p283 = pneg %p122
      %p284 = pneg %p146
      %p285 = pneg %p143
      %p286 = pneg %p167
      %p287 = pneg %p164
      %p288 = pneg %p193
      %p289 = pneg %p190
      %p290 = scmp.lt.s32.totalorder %s20, 1
      %s291 = scalar_select %p290, %s20, 1
      %s292 = smul.addr %s291, 8
      %s293 = scalar_lea.vmem %s7, %s292
      %p294 = pneg %p219
      %p295 = pneg %p216
      %p296 = scmp.lt.s32.totalorder %s20, 1
      %s297 = scalar_select %p296, %s20, 1
      %s298 = smul.addr %s297, 8
      %s299 = scalar_lea.vmem %s8, %s298
      %p300 = scmp.lt.s32.totalorder %s20, 1
      %s301 = scalar_select %p300, %s20, 1
      %s302 = smul.addr %s301, 8
      %s303 = scalar_lea.vmem %s0, %s302
      %p304 = scmp.lt.s32.totalorder %s20, 1
      %s305 = scalar_select %p304, %s20, 1
      %s306 = smul.addr %s305, 8
      %s307 = scalar_lea.vmem %s7, %s306
      %p308 = scmp.lt.s32.totalorder %s20, 1
      %s309 = scalar_select %p308, %s20, 1
      %s310 = smul.addr %s309, 8
      %s311 = scalar_lea.vmem %s8, %s310
      %v312 = vld [vmem:[%s303] sm:$0xff]
      %v313 = vld [vmem:[%s1] sm:$0xff]
      %v314 = vld [vmem:[%s1 + $0x8] sm:$0xff]
      %v315 = vld [vmem:[%s1 + $0x10] sm:$0xff]
      %v316 = vld [vmem:[%s1 + $0x18] sm:$0xff]
      %v317 = vld [vmem:[%s2] sm:$0x1]
      %v319 = vlaneseq
      %v320 = vshrl.u32 %v319, 7
      %v321 = vsub.s32 0, %v320
      %v322 = vrot.slane %v317, %v321
      %vm324 = vcmask 261120
      %v326 = vsel %vm324, %v312, 0
      %328 = vmatprep.subr.mxu0 0.0
      %329 = vmatpush1.msra.mxu0 %v313
      %330 = vmatprep.subr.mxu0 0.0
      %331 = vmatpush1.msra.mxu0 %v314
      %332 = vmatprep.subr.mxu0 0.0
      %333 = vmatpush1.msra.mxu0 %v315
      %334 = vmatprep.subr.mxu0 0.0
      %335 = vmatpush1.msra.mxu0 %v316
      %336 = vmatprep.subr.mxu0 0.0
      %337 = vmatpush1.msra.mxu0 0.0
      %338 = vmatprep.subr.mxu0 0.0
      %339 = vmatpush1.msra.mxu0 0.0
      %340 = vmatprep.subr.mxu0 0.0
      %341 = vmatpush1.msra.mxu0 0.0
      %342 = vmatprep.subr.mxu0 0.0
      %343 = vmatpush1.msra.mxu0 0.0
      %344 = vmatprep.subr.mxu0 0.0
      %345 = vmatpush1.msra.mxu0 0.0
      %346 = vmatprep.subr.mxu0 0.0
      %347 = vmatpush1.msra.mxu0 0.0
      %348 = vmatprep.subr.mxu0 0.0
      %349 = vmatpush1.msra.mxu0 0.0
      %350 = vmatprep.subr.mxu0 0.0
      %351 = vmatpush1.msra.mxu0 0.0
      %352 = vmatprep.subr.mxu0 0.0
      %353 = vmatpush1.msra.mxu0 0.0
      %354 = vmatprep.subr.mxu0 0.0
      %355 = vmatpush1.msra.mxu0 0.0
      %356 = vmatprep.subr.mxu0 0.0
      %357 = vmatpush1.msra.mxu0 0.0
      %358 = vmatprep.subr.mxu0 0.0
      %359 = vmatpush1.msra.mxu0 0.0
      %360 = vmatprep.subr.mxu0 0.0
      %361 = vmatpush1.msra.mxu0 0.0
      %362 = vmatprep.subr.mxu0 0.0
      %363 = vmatpush1.msra.mxu0 0.0
      %364 = vmatprep.subr.mxu0 0.0
      %365 = vmatpush1.msra.mxu0 0.0
      %366 = vmatprep.subr.mxu0 0.0
      %367 = vmatpush1.msra.mxu0 0.0
      %368 = vmatprep.subr.mxu0 0.0
      %369 = vmatpush1.msra.mxu0 0.0
      %370 = vmatprep.subr.mxu0 0.0
      %371 = vmatpush1.msra.mxu0 0.0
      %372 = vmatprep.subr.mxu0 0.0
      %373 = vmatpush1.msra.mxu0 0.0
      %374 = vmatprep.subr.mxu0 0.0
      %375 = vmatpush1.msra.mxu0 0.0
      %376 = vmatprep.subr.mxu0 0.0
      %377 = vmatpush1.msra.mxu0 0.0
      %378 = vmatprep.subr.mxu0 0.0
      %379 = vmatpush1.msra.mxu0 0.0
      %380 = vmatprep.subr.mxu0 0.0
      %381 = vmatpush1.msra.mxu0 0.0
      %382 = vmatprep.subr.mxu0 0.0
      %383 = vmatpush1.msra.mxu0 0.0
      %384 = vmatprep.subr.mxu0 0.0
      %385 = vmatpush1.msra.mxu0 0.0
      %386 = vmatprep.subr.mxu0 0.0
      %387 = vmatpush1.msra.mxu0 0.0
      %388 = vmatprep.subr.mxu0 0.0
      %389 = vmatpush1.msra.mxu0 0.0
      %390 = vmatprep.subr.mxu0 0.0
      %391 = vmatpush1.msra.mxu0 0.0
      %392 = vmatprep.mubr.f32.mxu0 0.0
      %393 = vmatmul.mubr.f32.gmra.mrb[0].mxu0 %v326
      %v394 = vpop.f32.mrb[0].mxu0
      %v395 = vadd.f32 %v322, %v394
      %v396 = vpop.f32.mrb[0].mxu0
      %397 = vdwg.mxu0
      %v398 = vmax.f32 %v395, 0.0
      %v399 = vld [vmem:[%s3] sm:$0xff]
      %v400 = vld [vmem:[%s3 + $0x8] sm:$0xff]
      %v401 = vld [vmem:[%s3 + $0x10] sm:$0xff]
      %v402 = vld [vmem:[%s3 + $0x18] sm:$0xff]
      %v403 = vld [vmem:[%s4] sm:$0x1]
      %v405 = vlaneseq
      %v406 = vshrl.u32 %v405, 7
      %v407 = vsub.s32 0, %v406
      %v408 = vrot.slane %v403, %v407
      %v411 = vsel %vm324, %v398, 0
      %413 = vmatprep.subr.mxu0 0.0
      %414 = vmatpush1.msra.mxu0 %v399
      %415 = vmatprep.subr.mxu0 0.0
      %416 = vmatpush1.msra.mxu0 %v400
      %417 = vmatprep.subr.mxu0 0.0
      %418 = vmatpush1.msra.mxu0 %v401
      %419 = vmatprep.subr.mxu0 0.0
      %420 = vmatpush1.msra.mxu0 %v402
      %421 = vmatprep.subr.mxu0 0.0
      %422 = vmatpush1.msra.mxu0 0.0
      %423 = vmatprep.subr.mxu0 0.0
      %424 = vmatpush1.msra.mxu0 0.0
      %425 = vmatprep.subr.mxu0 0.0
      %426 = vmatpush1.msra.mxu0 0.0
      %427 = vmatprep.subr.mxu0 0.0
      %428 = vmatpush1.msra.mxu0 0.0
      %429 = vmatprep.subr.mxu0 0.0
      %430 = vmatpush1.msra.mxu0 0.0
      %431 = vmatprep.subr.mxu0 0.0
      %432 = vmatpush1.msra.mxu0 0.0
      %433 = vmatprep.subr.mxu0 0.0
      %434 = vmatpush1.msra.mxu0 0.0
      %435 = vmatprep.subr.mxu0 0.0
      %436 = vmatpush1.msra.mxu0 0.0
      %437 = vmatprep.subr.mxu0 0.0
      %438 = vmatpush1.msra.mxu0 0.0
      %439 = vmatprep.subr.mxu0 0.0
      %440 = vmatpush1.msra.mxu0 0.0
      %441 = vmatprep.subr.mxu0 0.0
      %442 = vmatpush1.msra.mxu0 0.0
      %443 = vmatprep.subr.mxu0 0.0
      %444 = vmatpush1.msra.mxu0 0.0
      %445 = vmatprep.subr.mxu0 0.0
      %446 = vmatpush1.msra.mxu0 0.0
      %447 = vmatprep.subr.mxu0 0.0
      %448 = vmatpush1.msra.mxu0 0.0
      %449 = vmatprep.subr.mxu0 0.0
      %450 = vmatpush1.msra.mxu0 0.0
      %451 = vmatprep.subr.mxu0 0.0
      %452 = vmatpush1.msra.mxu0 0.0
      %453 = vmatprep.subr.mxu0 0.0
      %454 = vmatpush1.msra.mxu0 0.0
      %455 = vmatprep.subr.mxu0 0.0
      %456 = vmatpush1.msra.mxu0 0.0
      %457 = vmatprep.subr.mxu0 0.0
      %458 = vmatpush1.msra.mxu0 0.0
      %459 = vmatprep.subr.mxu0 0.0
      %460 = vmatpush1.msra.mxu0 0.0
      %461 = vmatprep.subr.mxu0 0.0
      %462 = vmatpush1.msra.mxu0 0.0
      %463 = vmatprep.subr.mxu0 0.0
      %464 = vmatpush1.msra.mxu0 0.0
      %465 = vmatprep.subr.mxu0 0.0
      %466 = vmatpush1.msra.mxu0 0.0
      %467 = vmatprep.subr.mxu0 0.0
      %468 = vmatpush1.msra.mxu0 0.0
      %469 = vmatprep.subr.mxu0 0.0
      %470 = vmatpush1.msra.mxu0 0.0
      %471 = vmatprep.subr.mxu0 0.0
      %472 = vmatpush1.msra.mxu0 0.0
      %473 = vmatprep.subr.mxu0 0.0
      %474 = vmatpush1.msra.mxu0 0.0
      %475 = vmatprep.subr.mxu0 0.0
      %476 = vmatpush1.msra.mxu0 0.0
      %477 = vmatprep.mubr.f32.mxu0 0.0
      %478 = vmatmul.mubr.f32.gmra.mrb[0].mxu0 %v411
      %v479 = vpop.f32.mrb[0].mxu0
      %v480 = vadd.f32 %v408, %v479
      %v481 = vpop.f32.mrb[0].mxu0
      %482 = vdwg.mxu0
      %v483 = vld [vmem:[%s5] sm:$0xff]
      %v484 = vld [vmem:[%s5 + $0x8] sm:$0xff]
      %v485 = vld [vmem:[%s5 + $0x10] sm:$0xff]
      %v486 = vld [vmem:[%s5 + $0x18] sm:$0xff]
      %v487 = vld [vmem:[%s6] sm:$0x1]
      %v489 = vlaneseq
      %v490 = vshrl.u32 %v489, 7
      %v491 = vsub.s32 0, %v490
      %v492 = vrot.slane %v487, %v491
      %494 = vrot.lane.b32.xlu0 %v398, 96
      %v495 = vpop.permute.xlu0 %494
      %v496 = vsel %vm324, %v495, 0
      %498 = vmatprep.subr.mxu0 0.0
      %499 = vmatpush1.msra.mxu0 %v483
      %500 = vmatprep.subr.mxu0 0.0
      %501 = vmatpush1.msra.mxu0 %v484
      %502 = vmatprep.subr.mxu0 0.0
      %503 = vmatpush1.msra.mxu0 %v485
      %504 = vmatprep.subr.mxu0 0.0
      %505 = vmatpush1.msra.mxu0 %v486
      %506 = vmatprep.subr.mxu0 0.0
      %507 = vmatpush1.msra.mxu0 0.0
      %508 = vmatprep.subr.mxu0 0.0
      %509 = vmatpush1.msra.mxu0 0.0
      %510 = vmatprep.subr.mxu0 0.0
      %511 = vmatpush1.msra.mxu0 0.0
      %512 = vmatprep.subr.mxu0 0.0
      %513 = vmatpush1.msra.mxu0 0.0
      %514 = vmatprep.subr.mxu0 0.0
      %515 = vmatpush1.msra.mxu0 0.0
      %516 = vmatprep.subr.mxu0 0.0
      %517 = vmatpush1.msra.mxu0 0.0
      %518 = vmatprep.subr.mxu0 0.0
      %519 = vmatpush1.msra.mxu0 0.0
      %520 = vmatprep.subr.mxu0 0.0
      %521 = vmatpush1.msra.mxu0 0.0
      %522 = vmatprep.subr.mxu0 0.0
      %523 = vmatpush1.msra.mxu0 0.0
      %524 = vmatprep.subr.mxu0 0.0
      %525 = vmatpush1.msra.mxu0 0.0
      %526 = vmatprep.subr.mxu0 0.0
      %527 = vmatpush1.msra.mxu0 0.0
      %528 = vmatprep.subr.mxu0 0.0
      %529 = vmatpush1.msra.mxu0 0.0
      %530 = vmatprep.subr.mxu0 0.0
      %531 = vmatpush1.msra.mxu0 0.0
      %532 = vmatprep.subr.mxu0 0.0
      %533 = vmatpush1.msra.mxu0 0.0
      %534 = vmatprep.subr.mxu0 0.0
      %535 = vmatpush1.msra.mxu0 0.0
      %536 = vmatprep.subr.mxu0 0.0
      %537 = vmatpush1.msra.mxu0 0.0
      %538 = vmatprep.subr.mxu0 0.0
      %539 = vmatpush1.msra.mxu0 0.0
      %540 = vmatprep.subr.mxu0 0.0
      %541 = vmatpush1.msra.mxu0 0.0
      %542 = vmatprep.subr.mxu0 0.0
      %543 = vmatpush1.msra.mxu0 0.0
      %544 = vmatprep.subr.mxu0 0.0
      %545 = vmatpush1.msra.mxu0 0.0
      %546 = vmatprep.subr.mxu0 0.0
      %547 = vmatpush1.msra.mxu0 0.0
      %548 = vmatprep.subr.mxu0 0.0
      %549 = vmatpush1.msra.mxu0 0.0
      %550 = vmatprep.subr.mxu0 0.0
      %551 = vmatpush1.msra.mxu0 0.0
      %552 = vmatprep.subr.mxu0 0.0
      %553 = vmatpush1.msra.mxu0 0.0
      %554 = vmatprep.subr.mxu0 0.0
      %555 = vmatpush1.msra.mxu0 0.0
      %556 = vmatprep.subr.mxu0 0.0
      %557 = vmatpush1.msra.mxu0 0.0
      %558 = vmatprep.subr.mxu0 0.0
      %559 = vmatpush1.msra.mxu0 0.0
      %560 = vmatprep.subr.mxu0 0.0
      %561 = vmatpush1.msra.mxu0 0.0
      %562 = vmatprep.mubr.f32.mxu0 0.0
      %563 = vmatmul.mubr.f32.gmra.mrb[0].mxu0 %v496
      %v564 = vpop.f32.mrb[0].mxu0
      %v565 = vadd.f32 %v492, %v564
      %v566 = vpop.f32.mrb[0].mxu0
      %567 = vdwg.mxu0
      %568 = vst.msk [vmem:[%s307] sm:$0xff] %vm324, %v480
      %vm569 = vcmask 31744
      %570 = vst.msk [vmem:[%s311] sm:$0xff] %vm569, %v565
      %p571 = scmp.lt.s32.totalorder %s20, 1
      %s572 = scalar_select %p571, %s20, 1
      %s573 = smul.addr %s572, 8
      %s574 = scalar_lea.vmem %s7, %s573
      %p575 = scmp.lt.s32.totalorder %s20, 1
      %s576 = scalar_select %p575, %s20, 1
      %s577 = smul.addr %s576, 8
      %s578 = scalar_lea.vmem %s8, %s577
      // Predicated region
      $region49: #{decoder_forward.1} parent=47 // pred_check
        %p579 = pneg %p190
      $region50: #{decoder_forward.1} parent=47 // pred_check_branch
        %581 = sbr.rel (%p579) target = $region52
      $region51: #{decoder_forward.1} parent=47 // pred_region
        _
      $region52: #{decoder_forward.1} parent=47 // pred_fallthru
        _
      // Predicated region
      $region53: #{decoder_forward.1} parent=47 // pred_check
        %p582 = pneg %p216
      $region54: #{decoder_forward.1} parent=47 // pred_check_branch
        %584 = sbr.rel (%p582) target = $region56
      $region55: #{decoder_forward.1} parent=47 // pred_region
        _
      $region56: #{decoder_forward.1} parent=47 // pred_fallthru
        _
    $region48: #{decoder_forward.1} parent=5 // pred_fallthru
      _
    %p585 = scmp.le.s32.totalorder 2, %s15
    // Predicated region
    $region57: #{decoder_forward.1} parent=5 // pred_check
      %p586 = pneg %p585
    $region58: #{decoder_forward.1} parent=5 // pred_check_branch
      %588 = sbr.rel (%p586) target = $region60
    $region59: #{decoder_forward.1} parent=5 // pred_region
      %s589 = ssub.s32 %s15, 2
      // Predicated region
      $region61: #{decoder_forward.1} parent=59 // pred_check
        %p590 = pneg %p196
      $region62: #{decoder_forward.1} parent=59 // pred_check_branch
        %592 = sbr.rel (%p590) target = $region64
      $region63: #{decoder_forward.1} parent=59 // pred_region
        %p593 = scmp.lt.s32.totalorder %s21, 1
        %s594 = scalar_select %p593, %s21, 1
        %s595 = smul.addr %s594, 8
        %s596 = scalar_lea.vmem %s7, %s595
      $region64: #{decoder_forward.1} parent=59 // pred_fallthru
        _
      // Predicated region
      $region65: #{decoder_forward.1} parent=59 // pred_check
        %p597 = pneg %p222
      $region66: #{decoder_forward.1} parent=59 // pred_check_branch
        %599 = sbr.rel (%p597) target = $region68
      $region67: #{decoder_forward.1} parent=59 // pred_region
        %p600 = scmp.lt.s32.totalorder %s21, 1
        %s601 = scalar_select %p600, %s21, 1
        %s602 = smul.addr %s601, 8
        %s603 = scalar_lea.vmem %s8, %s602
      $region68: #{decoder_forward.1} parent=59 // pred_fallthru
        _
    $region60: #{decoder_forward.1} parent=5 // pred_fallthru
      _
  $region6: #{decoder_forward.1} parent=0 // loop_footer
    %s19 = sadd.s32 1, %s15
  $region7: #{decoder_forward.1} parent=0 // loop_footer_branch
    %14 = sbr.rel target = $region3
  $region8: #{decoder_forward.1} parent=0 // loop_exit
    _

// kernel: decoder_forward.1
$region0: #{decoder_forward.1}
  #allocation0 [shape = 'u32[]', space=smem, size = 0x4, offset = 0x4, fixed_abs, tag = 'smem constant byte address 0x4 - core index']
  #allocation1 [shape = 'u32[144,128]{1,0:T(1,128)}', space=vmem, size = 0x12000, scoped, tag = 'internal scratch']
  %s0 = inlined_call_operand.vmem [shape: f32[16,32], index: 0, kind: input, shape index: {}]
  %s1 = inlined_call_operand.vmem [shape: f32[32,64], index: 1, kind: input, shape index: {}]
  %s2 = inlined_call_operand.vmem [shape: f32[1,64], index: 2, kind: input, shape index: {}]
  %s3 = inlined_call_operand.vmem [shape: f32[32,32], index: 3, kind: input, shape index: {}]
  %s4 = inlined_call_operand.vmem [shape: f32[1,32], index: 4, kind: input, shape index: {}]
  %s5 = inlined_call_operand.vmem [shape: f32[32,4], index: 5, kind: input, shape index: {}]
  %s6 = inlined_call_operand.vmem [shape: f32[1,4], index: 6, kind: input, shape index: {}]
  %s7 = inlined_call_operand.vmem [shape: f32[16,32], index: 7, kind: output, shape index: {0}]
  %s8 = inlined_call_operand.vmem [shape: f32[16,4], index: 8, kind: output, shape index: {1}]
  %9 = xla_tuple %s7, %s8
  %s10 = sld [smem:[#allocation0]]
  $region69: #{decoder_forward.1} parent=0
    _
  %s12 = ssub.s32 1, %s10
  %s13 = scalar_select 0, %s12, %s10
  loop: start=0, step=1, limit=4
  $region2: #{decoder_forward.1} parent=0 // loop_pre_header
    _
  $region3: #{decoder_forward.1} parent=0 // loop_header
    %s15 = sphi 0, %s19
    %p16 = scmp.ge.s32.totalorder %s15, 4
    %s25 = sphi 0, %s27
    %s28 = sphi 0, %s25
    %s29 = sphi 0, %s28
    %s45 = sphi 0, %s29
    %s49 = sphi 0, %s49
    %s51 = sphi 0, %s49
    %s52 = sphi 0, %s51
    %s66 = sphi 0, %s52
    %s70 = sphi 0, %s70
    %s72 = sphi 0, %s70
    %s73 = sphi 0, %s72
    %s87 = sphi 0, %s73
    %s91 = sphi 0, %s91
    %s93 = sphi 0, %s91
    %s94 = sphi 0, %s93
    %s108 = sphi 0, %s94
    %s112 = sphi 0, %s112
    %s114 = sphi 0, %s112
    %s115 = sphi 0, %s114
    %s129 = sphi 0, %s115
    %s133 = sphi 0, %s133
    %s135 = sphi 0, %s133
    %s136 = sphi 0, %s135
    %s150 = sphi 0, %s136
    %s154 = sphi 0, %s154
    %s156 = sphi 0, %s154
    %s157 = sphi 0, %s156
    %s171 = sphi 0, %s157
    %s177 = sphi 0, %s179
    %s180 = sphi 0, %s177
    %s181 = sphi 0, %s180
    %s197 = sphi 0, %s181
    %s203 = sphi 0, %s205
    %s206 = sphi 0, %s203
    %s207 = sphi 0, %s206
    %s223 = sphi 0, %s207
  $region4: #{decoder_forward.1} parent=0 // loop_header_branch
    %18 = sbr.rel (%p16) target = $region8
  $region5: #{decoder_forward.1} parent=0 // loop_body
    %s20 = ssub.s32 %s15, 1
    %s21 = ssub.s32 %s15, 2
    %s22 = sadd.s32 %s15, 1
    %s23 = ssub.s32 %s15, %s22
    %p24 = scmp.eq.s32.totalorder %s23, 0
    %s26 = sadd.s32 %s25, 1
    %s27 = scalar_select %p24, %s25, %s26
    %p30 = pneg %p24
    %p31 = scmp.eq.s32.totalorder %s15, 1
    %p32 = por %p30, %p31
    %p33 = scmp.ne.s32.totalorder %s25, %s28
    %p34 = scmp.eq.s32.totalorder %s15, 0
    %p35 = por %p33, %p34
    %p36 = scmp.ne.s32.totalorder %s25, %s28
    %p37 = scmp.eq.s32.totalorder %s20, 1
    %p38 = por %p36, %p37
    %p39 = scmp.ne.s32.totalorder %s28, %s29
    %p40 = scmp.eq.s32.totalorder %s20, 0
    %p41 = por %p39, %p40
    %p42 = scmp.ne.s32.totalorder %s28, %s29
    %p43 = scmp.eq.s32.totalorder %s21, 1
    %p44 = por %p42, %p43
    %p46 = scmp.ne.s32.totalorder %s29, %s45
    %p47 = scmp.eq.s32.totalorder %s21, 0
    %p48 = por %p46, %p47
    %s50 = sadd.s32 %s49, 1
    %p53 = scmp.eq.s32.totalorder %s15, 1
    %p54 = scmp.ne.s32.totalorder %s49, %s51
    %p55 = scmp.eq.s32.totalorder %s15, 0
    %p56 = por %p54, %p55
    %p57 = scmp.ne.s32.totalorder %s49, %s51
    %p58 = scmp.eq.s32.totalorder %s20, 1
    %p59 = por %p57, %p58
    %p60 = scmp.ne.s32.totalorder %s51, %s52
    %p61 = scmp.eq.s32.totalorder %s20, 0
    %p62 = por %p60, %p61
    %p63 = scmp.ne.s32.totalorder %s51, %s52
    %p64 = scmp.eq.s32.totalorder %s21, 1
    %p65 = por %p63, %p64
    %p67 = scmp.ne.s32.totalorder %s52, %s66
    %p68 = scmp.eq.s32.totalorder %s21, 0
    %p69 = por %p67, %p68
    %s71 = sadd.s32 %s70, 1
    %p74 = scmp.eq.s32.totalorder %s15, 1
    %p75 = scmp.ne.s32.totalorder %s70, %s72
    %p76 = scmp.eq.s32.totalorder %s15, 0
    %p77 = por %p75, %p76
    %p78 = scmp.ne.s32.totalorder %s70, %s72
    %p79 = scmp.eq.s32.totalorder %s20, 1
    %p80 = por %p78, %p79
    %p81 = scmp.ne.s32.totalorder %s72, %s73
    %p82 = scmp.eq.s32.totalorder %s20, 0
    %p83 = por %p81, %p82
    %p84 = scmp.ne.s32.totalorder %s72, %s73
    %p85 = scmp.eq.s32.totalorder %s21, 1
    %p86 = por %p84, %p85
    %p88 = scmp.ne.s32.totalorder %s73, %s87
    %p89 = scmp.eq.s32.totalorder %s21, 0
    %p90 = por %p88, %p89
    %s92 = sadd.s32 %s91, 1
    %p95 = scmp.eq.s32.totalorder %s15, 1
    %p96 = scmp.ne.s32.totalorder %s91, %s93
    %p97 = scmp.eq.s32.totalorder %s15, 0
    %p98 = por %p96, %p97
    %p99 = scmp.ne.s32.totalorder %s91, %s93
    %p100 = scmp.eq.s32.totalorder %s20, 1
    %p101 = por %p99, %p100
    %p102 = scmp.ne.s32.totalorder %s93, %s94
    %p103 = scmp.eq.s32.totalorder %s20, 0
    %p104 = por %p102, %p103
    %p105 = scmp.ne.s32.totalorder %s93, %s94
    %p106 = scmp.eq.s32.totalorder %s21, 1
    %p107 = por %p105, %p106
    %p109 = scmp.ne.s32.totalorder %s94, %s108
    %p110 = scmp.eq.s32.totalorder %s21, 0
    %p111 = por %p109, %p110
    %s113 = sadd.s32 %s112, 1
    %p116 = scmp.eq.s32.totalorder %s15, 1
    %p117 = scmp.ne.s32.totalorder %s112, %s114
    %p118 = scmp.eq.s32.totalorder %s15, 0
    %p119 = por %p117, %p118
    %p120 = scmp.ne.s32.totalorder %s112, %s114
    %p121 = scmp.eq.s32.totalorder %s20, 1
    %p122 = por %p120, %p121
    %p123 = scmp.ne.s32.totalorder %s114, %s115
    %p124 = scmp.eq.s32.totalorder %s20, 0
    %p125 = por %p123, %p124
    %p126 = scmp.ne.s32.totalorder %s114, %s115
    %p127 = scmp.eq.s32.totalorder %s21, 1
    %p128 = por %p126, %p127
    %p130 = scmp.ne.s32.totalorder %s115, %s129
    %p131 = scmp.eq.s32.totalorder %s21, 0
    %p132 = por %p130, %p131
    %s134 = sadd.s32 %s133, 1
    %p137 = scmp.eq.s32.totalorder %s15, 1
    %p138 = scmp.ne.s32.totalorder %s133, %s135
    %p139 = scmp.eq.s32.totalorder %s15, 0
    %p140 = por %p138, %p139
    %p141 = scmp.ne.s32.totalorder %s133, %s135
    %p142 = scmp.eq.s32.totalorder %s20, 1
    %p143 = por %p141, %p142
    %p144 = scmp.ne.s32.totalorder %s135, %s136
    %p145 = scmp.eq.s32.totalorder %s20, 0
    %p146 = por %p144, %p145
    %p147 = scmp.ne.s32.totalorder %s135, %s136
    %p148 = scmp.eq.s32.totalorder %s21, 1
    %p149 = por %p147, %p148
    %p151 = scmp.ne.s32.totalorder %s136, %s150
    %p152 = scmp.eq.s32.totalorder %s21, 0
    %p153 = por %p151, %p152
    %s155 = sadd.s32 %s154, 1
    %p158 = scmp.eq.s32.totalorder %s15, 1
    %p159 = scmp.ne.s32.totalorder %s154, %s156
    %p160 = scmp.eq.s32.totalorder %s15, 0
    %p161 = por %p159, %p160
    %p162 = scmp.ne.s32.totalorder %s154, %s156
    %p163 = scmp.eq.s32.totalorder %s20, 1
    %p164 = por %p162, %p163
    %p165 = scmp.ne.s32.totalorder %s156, %s157
    %p166 = scmp.eq.s32.totalorder %s20, 0
    %p167 = por %p165, %p166
    %p168 = scmp.ne.s32.totalorder %s156, %s157
    %p169 = scmp.eq.s32.totalorder %s21, 1
    %p170 = por %p168, %p169
    %p172 = scmp.ne.s32.totalorder %s157, %s171
    %p173 = scmp.eq.s32.totalorder %s21, 0
    %p174 = por %p172, %p173
    %s175 = ssub.s32 %s15, %s22
    %p176 = scmp.eq.s32.totalorder %s175, 0
    %s178 = sadd.s32 %s177, 1
    %s179 = scalar_select %p176, %s177, %s178
    %p182 = pneg %p176
    %p183 = scmp.eq.s32.totalorder %s15, 1
    %p184 = por %p182, %p183
    %p185 = scmp.ne.s32.totalorder %s177, %s180
    %p186 = scmp.eq.s32.totalorder %s15, 0
    %p187 = por %p185, %p186
    %p188 = scmp.ne.s32.totalorder %s177, %s180
    %p189 = scmp.eq.s32.totalorder %s20, 1
    %p190 = por %p188, %p189
    %p191 = scmp.ne.s32.totalorder %s180, %s181
    %p192 = scmp.eq.s32.totalorder %s20, 0
    %p193 = por %p191, %p192
    %p194 = scmp.ne.s32.totalorder %s180, %s181
    %p195 = scmp.eq.s32.totalorder %s21, 1
    %p196 = por %p194, %p195
    %p198 = scmp.ne.s32.totalorder %s181, %s197
    %p199 = scmp.eq.s32.totalorder %s21, 0
    %p200 = por %p198, %p199
    %s201 = ssub.s32 %s15, %s22
    %p202 = scmp.eq.s32.totalorder %s201, 0
    %s204 = sadd.s32 %s203, 1
    %s205 = scalar_select %p202, %s203, %s204
    %p208 = pneg %p202
    %p209 = scmp.eq.s32.totalorder %s15, 1
    %p210 = por %p208, %p209
    %p211 = scmp.ne.s32.totalorder %s203, %s206
    %p212 = scmp.eq.s32.totalorder %s15, 0
    %p213 = por %p211, %p212
    %p214 = scmp.ne.s32.totalorder %s203, %s206
    %p215 = scmp.eq.s32.totalorder %s20, 1
    %p216 = por %p214, %p215
    %p217 = scmp.ne.s32.totalorder %s206, %s207
    %p218 = scmp.eq.s32.totalorder %s20, 0
    %p219 = por %p217, %p218
    %p220 = scmp.ne.s32.totalorder %s206, %s207
    %p221 = scmp.eq.s32.totalorder %s21, 1
    %p222 = por %p220, %p221
    %p224 = scmp.ne.s32.totalorder %s207, %s223
    %p225 = scmp.eq.s32.totalorder %s21, 0
    %p226 = por %p224, %p225
    %p227 = scmp.le.s32.totalorder 1, %s15
    %p228 = scmp.lt.s32.totalorder %s15, 3
    %p229 = pnand %p227, %p228
    %p230 = pneg %p229
    // Predicated region
    $region9: #{decoder_forward.1} parent=5 // pred_check
      _
    $region10: #{decoder_forward.1} parent=5 // pred_check_branch
      %232 = sbr.rel (%p229) target = $region12
    $region11: #{decoder_forward.1} parent=5 // pred_region
      %s233 = ssub.s32 %s15, 1
      // Predicated region
      $region13: #{decoder_forward.1} parent=11 // pred_check
        %p234 = pneg %p62
      $region14: #{decoder_forward.1} parent=11 // pred_check_branch
        %236 = sbr.rel (%p234) target = $region16
      $region15: #{decoder_forward.1} parent=11 // pred_region
        _
      $region16: #{decoder_forward.1} parent=11 // pred_fallthru
        _
      // Predicated region
      $region17: #{decoder_forward.1} parent=11 // pred_check
        %p237 = pneg %p83
      $region18: #{decoder_forward.1} parent=11 // pred_check_branch
        %239 = sbr.rel (%p237) target = $region20
      $region19: #{decoder_forward.1} parent=11 // pred_region
        _
      $region20: #{decoder_forward.1} parent=11 // pred_fallthru
        _
      // Predicated region
      $region21: #{decoder_forward.1} parent=11 // pred_check
        %p240 = pneg %p104
      $region22: #{decoder_forward.1} parent=11 // pred_check_branch
        %242 = sbr.rel (%p240) target = $region24
      $region23: #{decoder_forward.1} parent=11 // pred_region
        _
      $region24: #{decoder_forward.1} parent=11 // pred_fallthru
        _
      // Predicated region
      $region25: #{decoder_forward.1} parent=11 // pred_check
        %p243 = pneg %p125
      $region26: #{decoder_forward.1} parent=11 // pred_check_branch
        %245 = sbr.rel (%p243) target = $region28
      $region27: #{decoder_forward.1} parent=11 // pred_region
        _
      $region28: #{decoder_forward.1} parent=11 // pred_fallthru
        _
      // Predicated region
      $region29: #{decoder_forward.1} parent=11 // pred_check
        %p246 = pneg %p146
      $region30: #{decoder_forward.1} parent=11 // pred_check_branch
        %248 = sbr.rel (%p246) target = $region32
      $region31: #{decoder_forward.1} parent=11 // pred_region
        _
      $region32: #{decoder_forward.1} parent=11 // pred_fallthru
        _
      // Predicated region
      $region33: #{decoder_forward.1} parent=11 // pred_check
        %p249 = pneg %p167
      $region34: #{decoder_forward.1} parent=11 // pred_check_branch
        %251 = sbr.rel (%p249) target = $region36
      $region35: #{decoder_forward.1} parent=11 // pred_region
        _
      $region36: #{decoder_forward.1} parent=11 // pred_fallthru
        _
    $region12: #{decoder_forward.1} parent=5 // pred_fallthru
      _
    %p252 = scmp.lt.s32.totalorder %s15, 2
    // Predicated region
    $region37: #{decoder_forward.1} parent=5 // pred_check
      %p253 = pneg %p252
    $region38: #{decoder_forward.1} parent=5 // pred_check_branch
      %255 = sbr.rel (%p253) target = $region40
    $region39: #{decoder_forward.1} parent=5 // pred_region
      // Predicated region
      $region41: #{decoder_forward.1} parent=39 // pred_check
        %p256 = pneg %p35
      $region42: #{decoder_forward.1} parent=39 // pred_check_branch
        %258 = sbr.rel (%p256) target = $region44
      $region43: #{decoder_forward.1} parent=39 // pred_region
        %p259 = scmp.lt.s32.totalorder %s15, 1
        %s260 = scalar_select %p259, %s15, 1
        %s261 = smul.addr %s260, 8
        %s262 = scalar_lea.vmem %s0, %s261
      $region44: #{decoder_forward.1} parent=39 // pred_fallthru
        _
    $region40: #{decoder_forward.1} parent=5 // pred_fallthru
      _
    %p263 = scmp.le.s32.totalorder 1, %s15
    %p264 = scmp.lt.s32.totalorder %s15, 3
    %p265 = pnand %p263, %p264
    %p266 = pneg %p265
    // Predicated region
    $region45: #{decoder_forward.1} parent=5 // pred_check
      _
    $region46: #{decoder_forward.1} parent=5 // pred_check_branch
      %268 = sbr.rel (%p265) target = $region48
    $region47: #{decoder_forward.1} parent=5 // pred_region
      %s269 = ssub.s32 %s15, 1
      %p270 = scmp.lt.s32.totalorder %s20, 1
      %s271 = scalar_select %p270, %s20, 1
      %s272 = smul.addr %s271, 8
      %s273 = scalar_lea.vmem %s0, %s272
      %p274 = pneg %p41
      %p275 = pneg %p38
      %p276 = pneg %p62
      %p277 = pneg %p59
      %p278 = pneg %p83
      %p279 = pneg %p80
      %p280 = pneg %p104
      %p281 = pneg %p101
      %p282 = pneg %p125
      %p283 = pneg %p122
      %p284 = pneg %p146
      %p285 = pneg %p143
      %p286 = pneg %p167
      %p287 = pneg %p164
      %p288 = pneg %p193
      %p289 = pneg %p190
      %p290 = scmp.lt.s32.totalorder %s20, 1
      %s291 = scalar_select %p290, %s20, 1
      %s292 = smul.addr %s291, 8
      %s293 = scalar_lea.vmem %s7, %s292
      %p294 = pneg %p219
      %p295 = pneg %p216
      %p296 = scmp.lt.s32.totalorder %s20, 1
      %s297 = scalar_select %p296, %s20, 1
      %s298 = smul.addr %s297, 8
      %s299 = scalar_lea.vmem %s8, %s298
      %p300 = scmp.lt.s32.totalorder %s20, 1
      %s301 = scalar_select %p300, %s20, 1
      %s302 = smul.addr %s301, 8
      %s303 = scalar_lea.vmem %s0, %s302
      %p304 = scmp.lt.s32.totalorder %s20, 1
      %s305 = scalar_select %p304, %s20, 1
      %s306 = smul.addr %s305, 8
      %s307 = scalar_lea.vmem %s7, %s306
      %p308 = scmp.lt.s32.totalorder %s20, 1
      %s309 = scalar_select %p308, %s20, 1
      %s310 = smul.addr %s309, 8
      %s311 = scalar_lea.vmem %s8, %s310
      %v312 = vld [vmem:[%s303] sm:$0xff]
      %v313 = vld [vmem:[%s1] sm:$0xff]
      %v314 = vld [vmem:[%s1 + $0x8] sm:$0xff]
      %v315 = vld [vmem:[%s1 + $0x10] sm:$0xff]
      %v316 = vld [vmem:[%s1 + $0x18] sm:$0xff]
      %v317 = vld [vmem:[%s2] sm:$0x1]
      %v319 = vlaneseq
      %v320 = vshrl.u32 %v319, 7
      %v321 = vsub.s32 0, %v320
      %v322 = vrot.slane %v317, %v321
      %vm324 = vcmask 261120
      %v326 = vsel %vm324, %v312, 0
      %328 = vmatprep.subr.mxu0 0.0
      %329 = vmatpush1.msra.mxu0 %v313
      %330 = vmatprep.subr.mxu0 0.0
      %331 = vmatpush1.msra.mxu0 %v314
      %332 = vmatprep.subr.mxu0 0.0
      %333 = vmatpush1.msra.mxu0 %v315
      %334 = vmatprep.subr.mxu0 0.0
      %335 = vmatpush1.msra.mxu0 %v316
      %336 = vmatprep.subr.mxu0 0.0
      %337 = vmatpush1.msra.mxu0 0.0
      %338 = vmatprep.subr.mxu0 0.0
      %339 = vmatpush1.msra.mxu0 0.0
      %340 = vmatprep.subr.mxu0 0.0
      %341 = vmatpush1.msra.mxu0 0.0
      %342 = vmatprep.subr.mxu0 0.0
      %343 = vmatpush1.msra.mxu0 0.0
      %344 = vmatprep.subr.mxu0 0.0
      %345 = vmatpush1.msra.mxu0 0.0
      %346 = vmatprep.subr.mxu0 0.0
      %347 = vmatpush1.msra.mxu0 0.0
      %348 = vmatprep.subr.mxu0 0.0
      %349 = vmatpush1.msra.mxu0 0.0
      %350 = vmatprep.subr.mxu0 0.0
      %351 = vmatpush1.msra.mxu0 0.0
      %352 = vmatprep.subr.mxu0 0.0
      %353 = vmatpush1.msra.mxu0 0.0
      %354 = vmatprep.subr.mxu0 0.0
      %355 = vmatpush1.msra.mxu0 0.0
      %356 = vmatprep.subr.mxu0 0.0
      %357 = vmatpush1.msra.mxu0 0.0
      %358 = vmatprep.subr.mxu0 0.0
      %359 = vmatpush1.msra.mxu0 0.0
      %360 = vmatprep.subr.mxu0 0.0
      %361 = vmatpush1.msra.mxu0 0.0
      %362 = vmatprep.subr.mxu0 0.0
      %363 = vmatpush1.msra.mxu0 0.0
      %364 = vmatprep.subr.mxu0 0.0
      %365 = vmatpush1.msra.mxu0 0.0
      %366 = vmatprep.subr.mxu0 0.0
      %367 = vmatpush1.msra.mxu0 0.0
      %368 = vmatprep.subr.mxu0 0.0
      %369 = vmatpush1.msra.mxu0 0.0
      %370 = vmatprep.subr.mxu0 0.0
      %371 = vmatpush1.msra.mxu0 0.0
      %372 = vmatprep.subr.mxu0 0.0
      %373 = vmatpush1.msra.mxu0 0.0
      %374 = vmatprep.subr.mxu0 0.0
      %375 = vmatpush1.msra.mxu0 0.0
      %376 = vmatprep.subr.mxu0 0.0
      %377 = vmatpush1.msra.mxu0 0.0
      %378 = vmatprep.subr.mxu0 0.0
      %379 = vmatpush1.msra.mxu0 0.0
      %380 = vmatprep.subr.mxu0 0.0
      %381 = vmatpush1.msra.mxu0 0.0
      %382 = vmatprep.subr.mxu0 0.0
      %383 = vmatpush1.msra.mxu0 0.0
      %384 = vmatprep.subr.mxu0 0.0
      %385 = vmatpush1.msra.mxu0 0.0
      %386 = vmatprep.subr.mxu0 0.0
      %387 = vmatpush1.msra.mxu0 0.0
      %388 = vmatprep.subr.mxu0 0.0
      %389 = vmatpush1.msra.mxu0 0.0
      %390 = vmatprep.subr.mxu0 0.0
      %391 = vmatpush1.msra.mxu0 0.0
      %392 = vmatprep.mubr.f32.mxu0 0.0
      %393 = vmatmul.mubr.f32.gmra.mrb[0].mxu0 %v326
      %v394 = vpop.f32.mrb[0].mxu0
      %v395 = vadd.f32 %v322, %v394
      %v396 = vpop.f32.mrb[0].mxu0
      %397 = vdwg.mxu0
      %v398 = vmax.f32 %v395, 0.0
      %v399 = vld [vmem:[%s3] sm:$0xff]
      %v400 = vld [vmem:[%s3 + $0x8] sm:$0xff]
      %v401 = vld [vmem:[%s3 + $0x10] sm:$0xff]
      %v402 = vld [vmem:[%s3 + $0x18] sm:$0xff]
      %v403 = vld [vmem:[%s4] sm:$0x1]
      %v405 = vlaneseq
      %v406 = vshrl.u32 %v405, 7
      %v407 = vsub.s32 0, %v406
      %v408 = vrot.slane %v403, %v407
      %v411 = vsel %vm324, %v398, 0
      %413 = vmatprep.subr.mxu0 0.0
      %414 = vmatpush1.msra.mxu0 %v399
      %415 = vmatprep.subr.mxu0 0.0
      %416 = vmatpush1.msra.mxu0 %v400
      %417 = vmatprep.subr.mxu0 0.0
      %418 = vmatpush1.msra.mxu0 %v401
      %419 = vmatprep.subr.mxu0 0.0
      %420 = vmatpush1.msra.mxu0 %v402
      %421 = vmatprep.subr.mxu0 0.0
      %422 = vmatpush1.msra.mxu0 0.0
      %423 = vmatprep.subr.mxu0 0.0
      %424 = vmatpush1.msra.mxu0 0.0
      %425 = vmatprep.subr.mxu0 0.0
      %426 = vmatpush1.msra.mxu0 0.0
      %427 = vmatprep.subr.mxu0 0.0
      %428 = vmatpush1.msra.mxu0 0.0
      %429 = vmatprep.subr.mxu0 0.0
      %430 = vmatpush1.msra.mxu0 0.0
      %431 = vmatprep.subr.mxu0 0.0
      %432 = vmatpush1.msra.mxu0 0.0
      %433 = vmatprep.subr.mxu0 0.0
      %434 = vmatpush1.msra.mxu0 0.0
      %435 = vmatprep.subr.mxu0 0.0
      %436 = vmatpush1.msra.mxu0 0.0
      %437 = vmatprep.subr.mxu0 0.0
      %438 = vmatpush1.msra.mxu0 0.0
      %439 = vmatprep.subr.mxu0 0.0
      %440 = vmatpush1.msra.mxu0 0.0
      %441 = vmatprep.subr.mxu0 0.0
      %442 = vmatpush1.msra.mxu0 0.0
      %443 = vmatprep.subr.mxu0 0.0
      %444 = vmatpush1.msra.mxu0 0.0
      %445 = vmatprep.subr.mxu0 0.0
      %446 = vmatpush1.msra.mxu0 0.0
      %447 = vmatprep.subr.mxu0 0.0
      %448 = vmatpush1.msra.mxu0 0.0
      %449 = vmatprep.subr.mxu0 0.0
      %450 = vmatpush1.msra.mxu0 0.0
      %451 = vmatprep.subr.mxu0 0.0
      %452 = vmatpush1.msra.mxu0 0.0
      %453 = vmatprep.subr.mxu0 0.0
      %454 = vmatpush1.msra.mxu0 0.0
      %455 = vmatprep.subr.mxu0 0.0
      %456 = vmatpush1.msra.mxu0 0.0
      %457 = vmatprep.subr.mxu0 0.0
      %458 = vmatpush1.msra.mxu0 0.0
      %459 = vmatprep.subr.mxu0 0.0
      %460 = vmatpush1.msra.mxu0 0.0
      %461 = vmatprep.subr.mxu0 0.0
      %462 = vmatpush1.msra.mxu0 0.0
      %463 = vmatprep.subr.mxu0 0.0
      %464 = vmatpush1.msra.mxu0 0.0
      %465 = vmatprep.subr.mxu0 0.0
      %466 = vmatpush1.msra.mxu0 0.0
      %467 = vmatprep.subr.mxu0 0.0
      %468 = vmatpush1.msra.mxu0 0.0
      %469 = vmatprep.subr.mxu0 0.0
      %470 = vmatpush1.msra.mxu0 0.0
      %471 = vmatprep.subr.mxu0 0.0
      %472 = vmatpush1.msra.mxu0 0.0
      %473 = vmatprep.subr.mxu0 0.0
      %474 = vmatpush1.msra.mxu0 0.0
      %475 = vmatprep.subr.mxu0 0.0
      %476 = vmatpush1.msra.mxu0 0.0
      %477 = vmatprep.mubr.f32.mxu0 0.0
      %478 = vmatmul.mubr.f32.gmra.mrb[0].mxu0 %v411
      %v479 = vpop.f32.mrb[0].mxu0
      %v480 = vadd.f32 %v408, %v479
      %v481 = vpop.f32.mrb[0].mxu0
      %482 = vdwg.mxu0
      %v483 = vld [vmem:[%s5] sm:$0xff]
      %v484 = vld [vmem:[%s5 + $0x8] sm:$0xff]
      %v485 = vld [vmem:[%s5 + $0x10] sm:$0xff]
      %v486 = vld [vmem:[%s5 + $0x18] sm:$0xff]
      %v487 = vld [vmem:[%s6] sm:$0x1]
      %v489 = vlaneseq
      %v490 = vshrl.u32 %v489, 7
      %v491 = vsub.s32 0, %v490
      %v492 = vrot.slane %v487, %v491
      %494 = vrot.lane.b32.xlu0 %v398, 96
      %v495 = vpop.permute.xlu0 %494
      %v496 = vsel %vm324, %v495, 0
      %498 = vmatprep.subr.mxu0 0.0
      %499 = vmatpush1.msra.mxu0 %v483
      %500 = vmatprep.subr.mxu0 0.0
      %501 = vmatpush1.msra.mxu0 %v484
      %502 = vmatprep.subr.mxu0 0.0
      %503 = vmatpush1.msra.mxu0 %v485
      %504 = vmatprep.subr.mxu0 0.0
      %505 = vmatpush1.msra.mxu0 %v486
      %506 = vmatprep.subr.mxu0 0.0
      %507 = vmatpush1.msra.mxu0 0.0
      %508 = vmatprep.subr.mxu0 0.0
      %509 = vmatpush1.msra.mxu0 0.0
      %510 = vmatprep.subr.mxu0 0.0
      %511 = vmatpush1.msra.mxu0 0.0
      %512 = vmatprep.subr.mxu0 0.0
      %513 = vmatpush1.msra.mxu0 0.0
      %514 = vmatprep.subr.mxu0 0.0
      %515 = vmatpush1.msra.mxu0 0.0
      %516 = vmatprep.subr.mxu0 0.0
      %517 = vmatpush1.msra.mxu0 0.0
      %518 = vmatprep.subr.mxu0 0.0
      %519 = vmatpush1.msra.mxu0 0.0
      %520 = vmatprep.subr.mxu0 0.0
      %521 = vmatpush1.msra.mxu0 0.0
      %522 = vmatprep.subr.mxu0 0.0
      %523 = vmatpush1.msra.mxu0 0.0
      %524 = vmatprep.subr.mxu0 0.0
      %525 = vmatpush1.msra.mxu0 0.0
      %526 = vmatprep.subr.mxu0 0.0
      %527 = vmatpush1.msra.mxu0 0.0
      %528 = vmatprep.subr.mxu0 0.0
      %529 = vmatpush1.msra.mxu0 0.0
      %530 = vmatprep.subr.mxu0 0.0
      %531 = vmatpush1.msra.mxu0 0.0
      %532 = vmatprep.subr.mxu0 0.0
      %533 = vmatpush1.msra.mxu0 0.0
      %534 = vmatprep.subr.mxu0 0.0
      %535 = vmatpush1.msra.mxu0 0.0
      %536 = vmatprep.subr.mxu0 0.0
      %537 = vmatpush1.msra.mxu0 0.0
      %538 = vmatprep.subr.mxu0 0.0
      %539 = vmatpush1.msra.mxu0 0.0
      %540 = vmatprep.subr.mxu0 0.0
      %541 = vmatpush1.msra.mxu0 0.0
      %542 = vmatprep.subr.mxu0 0.0
      %543 = vmatpush1.msra.mxu0 0.0
      %544 = vmatprep.subr.mxu0 0.0
      %545 = vmatpush1.msra.mxu0 0.0
      %546 = vmatprep.subr.mxu0 0.0
      %547 = vmatpush1.msra.mxu0 0.0
      %548 = vmatprep.subr.mxu0 0.0
      %549 = vmatpush1.msra.mxu0 0.0
      %550 = vmatprep.subr.mxu0 0.0
      %551 = vmatpush1.msra.mxu0 0.0
      %552 = vmatprep.subr.mxu0 0.0
      %553 = vmatpush1.msra.mxu0 0.0
      %554 = vmatprep.subr.mxu0 0.0
      %555 = vmatpush1.msra.mxu0 0.0
      %556 = vmatprep.subr.mxu0 0.0
      %557 = vmatpush1.msra.mxu0 0.0
      %558 = vmatprep.subr.mxu0 0.0
      %559 = vmatpush1.msra.mxu0 0.0
      %560 = vmatprep.subr.mxu0 0.0
      %561 = vmatpush1.msra.mxu0 0.0
      %562 = vmatprep.mubr.f32.mxu0 0.0
      %563 = vmatmul.mubr.f32.gmra.mrb[0].mxu0 %v496
      %v564 = vpop.f32.mrb[0].mxu0
      %v565 = vadd.f32 %v492, %v564
      %v566 = vpop.f32.mrb[0].mxu0
      %567 = vdwg.mxu0
      %568 = vst.msk [vmem:[%s307] sm:$0xff] %vm324, %v480
      %vm569 = vcmask 31744
      %570 = vst.msk [vmem:[%s311] sm:$0xff] %vm569, %v565
      %p571 = scmp.lt.s32.totalorder %s20, 1
      %s572 = scalar_select %p571, %s20, 1
      %s573 = smul.addr %s572, 8
      %s574 = scalar_lea.vmem %s7, %s573
      %p575 = scmp.lt.s32.totalorder %s20, 1
      %s576 = scalar_select %p575, %s20, 1
      %s577 = smul.addr %s576, 8
      %s578 = scalar_lea.vmem %s8, %s577
      // Predicated region
      $region49: #{decoder_forward.1} parent=47 // pred_check
        %p579 = pneg %p190
      $region50: #{decoder_forward.1} parent=47 // pred_check_branch
        %581 = sbr.rel (%p579) target = $region52
      $region51: #{decoder_forward.1} parent=47 // pred_region
        _
      $region52: #{decoder_forward.1} parent=47 // pred_fallthru
        _
      // Predicated region
      $region53: #{decoder_forward.1} parent=47 // pred_check
        %p582 = pneg %p216
      $region54: #{decoder_forward.1} parent=47 // pred_check_branch
        %584 = sbr.rel (%p582) target = $region56
      $region55: #{decoder_forward.1} parent=47 // pred_region
        _
      $region56: #{decoder_forward.1} parent=47 // pred_fallthru
        _
    $region48: #{decoder_forward.1} parent=5 // pred_fallthru
      _
    %p585 = scmp.le.s32.totalorder 2, %s15
    // Predicated region
    $region57: #{decoder_forward.1} parent=5 // pred_check
      %p586 = pneg %p585
    $region58: #{decoder_forward.1} parent=5 // pred_check_branch
      %588 = sbr.rel (%p586) target = $region60
    $region59: #{decoder_forward.1} parent=5 // pred_region
      %s589 = ssub.s32 %s15, 2
      // Predicated region
      $region61: #{decoder_forward.1} parent=59 // pred_check
        %p590 = pneg %p196
      $region62: #{decoder_forward.1} parent=59 // pred_check_branch
        %592 = sbr.rel (%p590) target = $region64
      $region63: #{decoder_forward.1} parent=59 // pred_region
        %p593 = scmp.lt.s32.totalorder %s21, 1
        %s594 = scalar_select %p593, %s21, 1
        %s595 = smul.addr %s594, 8
        %s596 = scalar_lea.vmem %s7, %s595
      $region64: #{decoder_forward.1} parent=59 // pred_fallthru
        _
      // Predicated region
      $region65: #{decoder_forward.1} parent=59 // pred_check
        %p597 = pneg %p222
      $region66: #{decoder_forward.1} parent=59 // pred_check_branch
        %599 = sbr.rel (%p597) target = $region68
      $region67: #{decoder_forward.1} parent=59 // pred_region
        %p600 = scmp.lt.s32.totalorder %s21, 1
        %s601 = scalar_select %p600, %s21, 1
        %s602 = smul.addr %s601, 8
        %s603 = scalar_lea.vmem %s8, %s602
      $region68: #{decoder_forward.1} parent=59 // pred_fallthru
        _
    $region60: #{decoder_forward.1} parent=5 // pred_fallthru
      _
  $region6: #{decoder_forward.1} parent=0 // loop_footer
    %s19 = sadd.s32 1, %s15
  $region7: #{decoder_forward.1} parent=0 // loop_footer_branch
    %14 = sbr.rel target = $region3
  $region8: #{decoder_forward.1} parent=0 // loop_exit
    _

</llo_original>
